<compile_context>
chip_gen: v7x
topology: tpu7x:2x2x1
jax: 0.10.0
libtpu: 0.0.40
codegen_flags: <defaults>
</compile_context>

<pallas_src>
import math
import functools

import jax
import jax.numpy as jnp
from jax.experimental import pallas as pl
from jax.experimental.pallas import tpu as pltpu


# ---------------------------------------------------------------------------
# helpers
# ---------------------------------------------------------------------------
def _detect_vmem_capacity():
    try:
        cap = getattr(pltpu.get_tpu_info(), "vmem_capacity_bytes", None)
        if cap:
            return int(cap)
    except Exception:
        pass
    return 64 << 20            # conservative fallback (v7x per-core VMEM)


def _const_spec(shape):
    """BlockSpec for a grid-invariant block: single-buffered resident copy."""
    index_map = lambda *_: (0,) * len(shape)
    try:
        return pl.BlockSpec(shape, index_map, pipeline_mode=pl.Buffered(1))
    except Exception:          # older jax without pipeline_mode / Buffered
        return pl.BlockSpec(shape, index_map)


# ---------------------------------------------------------------------------
# Pallas kernels
# ---------------------------------------------------------------------------
def _ln_qkv_kernel(x_ref, g_ref, b_ref, w_ref, wb_ref, o_ref, *, eps):
    """LayerNorm(x) -> fused (D, 3D) QKV projection (bf16 MXU, f32 accumulate)."""
    x = x_ref[...]                                            # (TM, D) f32
    mean = jnp.mean(x, axis=-1, keepdims=True)
    var = jnp.mean(jnp.square(x - mean), axis=-1, keepdims=True)
    h = (x - mean) * jax.lax.rsqrt(var + eps) * g_ref[...] + b_ref[...]
    y = jnp.dot(h.astype(w_ref.dtype), w_ref[...],
                preferred_element_type=jnp.float32) + wb_ref[...]
    o_ref[...] = y.astype(o_ref.dtype)                        # (TM, 3D)


def _ln_ffn_kernel(x_ref, g_ref, b_ref, w1_ref, b1_ref, w2_ref, b2_ref, o_ref,
                   *, eps):
    """x + Linear2(GELU(Linear1(LayerNorm(x)))) with the residual fused."""
    # TODO(synk): tile the hidden dim F with an f32 accumulator (pl.when
    #             init/finalize, 'arbitrary' axis) when D*F weights exceed VMEM.
    x = x_ref[...]                                            # (TM, D) f32
    mean = jnp.mean(x, axis=-1, keepdims=True)
    var = jnp.mean(jnp.square(x - mean), axis=-1, keepdims=True)
    h = (x - mean) * jax.lax.rsqrt(var + eps) * g_ref[...] + b_ref[...]
    f = jnp.dot(h.astype(w1_ref.dtype), w1_ref[...],
                preferred_element_type=jnp.float32) + b1_ref[...]
    # exact (erf-based) GELU, matching torch.nn.functional.gelu default
    f = 0.5 * f * (1.0 + jax.lax.erf(f * 0.7071067811865476))
    f = jnp.dot(f.astype(w2_ref.dtype), w2_ref[...],
                preferred_element_type=jnp.float32) + b2_ref[...]
    o_ref[...] = (x + f).astype(o_ref.dtype)                  # (TM, D)


def _attn_kernel(qkv_ref, x_ref, er_ref, hsum_ref, hbc_ref, hb1_ref, *out_refs,
                 d_model, nhead, head_dim, shifts, pad):
    """Dilated multi-head self-attention for one batch element, all heads.

    Lane-dense (T, D) layout end to end; per-head reductions / broadcasts are
    two wide block-diagonal MXU dots (all A shifts batched along lanes).  All
    math in f32 (bf16 qkv intermediate is upcast on load) so the qk == 0
    pad-row mask semantics match the f32 reference exactly.
    """
    T = qkv_ref.shape[1]
    D, H, hd = d_model, nhead, head_dim
    A = len(shifts)
    Tp = T + pad
    inv_sqrt_hd = 1.0 / math.sqrt(hd)

    qkv = qkv_ref[0].astype(jnp.float32)                      # (T, 3D) f32
    q = qkv[:, 0:D]
    k = qkv[:, D:2 * D]
    v = qkv[:, 2 * D:3 * D]

    # relative-position term for all (shift, head) pairs in one MXU dot;
    # er_ref is the block-diagonal expansion of Er with columns [a*H + h].
    rel = jnp.dot(q, er_ref[...], preferred_element_type=jnp.float32)  # (T, A*H)

    # zero-pad K/V along time once (reference F.pad), reused by every shift.
    if pad > 0:
        zpad = jnp.zeros((pad, D), jnp.float32)
        kp = jnp.concatenate([k, zpad], axis=0)                # (Tp, D)
        vp = jnp.concatenate([v, zpad], axis=0)
    else:
        kp, vp = k, v

    def window(xp, s):
        # rows (t - s) mod Tp for t in [0, T): exact torch.roll-on-padded view.
        c = (-s) % Tp
        if c + T <= Tp:
            return xp[c:c + T]
        return jnp.concatenate([xp[c:], xp[:T + c - Tp]], axis=0)

    # batched q*k_window for all shifts along lanes -> one wide MXU reduction
    qk_cat = jnp.concatenate([q * window(kp, s) for s in shifts], axis=1)   # (T, A*D)
    qk_all = jnp.dot(qk_cat, hsum_ref[...],
                     preferred_element_type=jnp.float32)                    # (T, A*H)

    # reference: zeros_like(qk).masked_fill_(qk == 0, 1e-9)
    mask = jnp.where(qk_all == 0.0, 1e-9, 0.0)
    logits = (qk_all + rel) * inv_sqrt_hd + mask                            # (T, A*H)

    # softmax over the shift axis (columns a*H + h, a = 0..A-1)
    m = logits[:, 0:H]
    for a in range(1, A):
        m = jnp.maximum(m, logits[:, a * H:(a + 1) * H])                    # (T, H)
    e = jnp.exp(logits - jnp.concatenate([m] * A, axis=1))                  # (T, A*H)
    denom = e[:, 0:H]
    for a in range(1, A):
        denom = denom + e[:, a * H:(a + 1) * H]                             # (T, H)

    # broadcast unnormalized probs to head lanes (one MXU dot), weight V windows
    w_all = jnp.dot(e, hbc_ref[...], preferred_element_type=jnp.float32)    # (T, A*D)
    v_cat = jnp.concatenate([window(vp, s) for s in shifts], axis=1)        # (T, A*D)
    p = w_all * v_cat
    out = p[:, 0:D]                                                         # seed with a=0
    for a in range(1, A):
        out = out + p[:, a * D:(a + 1) * D]                                 # (T, D)

    # single reciprocal (EUP), broadcast head -> lanes on the MXU, normalize once
    r = pl.reciprocal(denom, approx=False)                                  # (T, H)
    out = out * jnp.dot(r, hb1_ref[...], preferred_element_type=jnp.float32)

    x = x_ref[0].astype(jnp.float32)
    out_refs[0][0] = (x + out).astype(out_refs[0].dtype)       # x1 = x + SA(x)
    if len(out_refs) > 1:
        out_refs[1][0] = out.astype(out_refs[1].dtype)         # x_ (SA block output)


# ---------------------------------------------------------------------------
# Layer forward (3 pallas_call launches)
# ---------------------------------------------------------------------------
def dilated_transformer_layer(x, params, *, nhead, left_attn_len=5, latency=10,
                              layer=0, layer_norm_eps=1e-5, row_tile=None,
                              matmul_dtype=jnp.bfloat16, return_sa=True):
    B, T, D = x.shape
    H = nhead
    hd = D // H
    assert hd * H == D, "d_model must be divisible by nhead"
    assert H <= 8, "reference kv_roll only rolls the first 8 heads (requires nhead <= 8)"
    A = left_attn_len + 1
    # NOTE: production shapes should keep D % 128 == 0 (lane-dense q/k/v slices).

    # static dilation schedule (matches the reference kv_roll exactly)
    shifts = tuple([-round((1 + layer) / 11 * latency)]
                   + [j * 2 ** layer for j in range(left_attn_len)])
    pad = 2 ** layer * (left_attn_len - 1)

    vmem_cap = _detect_vmem_capacity()
    cap = min(100 << 20, int(vmem_cap * 0.9))
    if row_tile is None:
        # 512 rows on 128 MiB VMEM parts (v5e/v6e), 256 on v7x (64 MiB VMEM)
        row_tile = 512 if vmem_cap >= (100 << 20) else 256
    N = B * T
    TM = N if N <= row_tile else max(8, (row_tile // 8) * 8)   # (8,128) sublane guard
    n_row_blocks = pl.cdiv(N, TM)

    def _limit(est_bytes):
        return int(min(cap, max(16 << 20, int(est_bytes * 1.5) + (2 << 20))))

    mm = matmul_dtype
    mm_b = jnp.dtype(mm).itemsize
    wqkv = params["wqkv"].astype(mm)            # pre-cast weights once in HBM
    w1 = params["w1"].astype(mm)
    w2 = params["w2"].astype(mm)
    F_dim = w1.shape[1]

    # ---- LN1 + fused QKV projection (row-tiled, weights resident) ----------
    est_qkv = (2 * TM * D * 4 + 2 * TM * 3 * D * mm_b          # act in/out (2-buf)
               + 2 * D * 3 * D * mm_b + 16 * D * 4             # weights + biases
               + TM * D * 4 + TM * 3 * D * 4)                  # in-kernel temporaries
    qkv = pl.pallas_call(
        functools.partial(_ln_qkv_kernel, eps=layer_norm_eps),
        out_shape=jax.ShapeDtypeStruct((N, 3 * D), mm),        # bf16 HBM intermediate
        grid=(n_row_blocks,),
        in_specs=[
            pl.BlockSpec((TM, D), lambda i: (i, 0)),
            _const_spec((1, D)),
            _const_spec((1, D)),
            _const_spec((D, 3 * D)),
            _const_spec((1, 3 * D)),
        ],
        out_specs=pl.BlockSpec((TM, 3 * D), lambda i: (i, 0)),
        compiler_params=pltpu.CompilerParams(
            dimension_semantics=("parallel",),
            vmem_limit_bytes=_limit(est_qkv)),
    )(x.reshape(N, D), params["g1"].reshape(1, D), params["be1"].reshape(1, D),
      wqkv, params["bqkv"].reshape(1, 3 * D)).reshape(B, T, 3 * D)

    # ---- dilated self-attention (all heads per batch element) --------------
    # constant mapping matrices, built once outside the kernel (hoisted)
    er = params["er"].astype(jnp.float32)                      # (H, hd, A)
    eyeH = jnp.eye(H, dtype=jnp.float32)
    eyeA = jnp.eye(A, dtype=jnp.float32)
    er_bd = jnp.einsum("hda,hg->hdag", er, eyeH).reshape(D, A * H)
    head_sum = jnp.repeat(eyeH, hd, axis=0)                    # (D, H): sum hd lanes / head
    head_bcast = head_sum.T                                    # (H, D): head -> lanes
    hsum_all = jnp.einsum("dh,ab->adbh", head_sum, eyeA).reshape(A * D, A * H)
    hbc_all = jnp.einsum("hd,ab->ahbd", head_bcast, eyeA).reshape(A * H, A * D)

    n_out = 2 if return_sa else 1
    est_attn = (2 * T * 3 * D * mm_b + 2 * T * D * 4 + n_out * 2 * T * D * 4
                + 2 * (D * A * H + 2 * A * D * A * H + H * D) * 4
                + T * 3 * D * 4 + 2 * (T + pad) * D * 4
                + 3 * T * A * D * 4 + 4 * T * A * H * 4 + 2 * T * D * 4)

    attn_out_shape = [jax.ShapeDtypeStruct((B, T, D), jnp.float32)]
    attn_out_specs = [pl.BlockSpec((1, T, D), lambda b: (b, 0, 0))]
    if return_sa:
        attn_out_shape.append(jax.ShapeDtypeStruct((B, T, D), jnp.float32))
        attn_out_specs.append(pl.BlockSpec((1, T, D), lambda b: (b, 0, 0)))

    attn_res = pl.pallas_call(
        functools.partial(_attn_kernel, d_model=D, nhead=H, head_dim=hd,
                          shifts=shifts, pad=pad),
        out_shape=tuple(attn_out_shape),
        grid=(B,),
        in_specs=[
            pl.BlockSpec((1, T, 3 * D), lambda b: (b, 0, 0)),
            pl.BlockSpec((1, T, D), lambda b: (b, 0, 0)),
            _const_spec((D, A * H)),
            _const_spec((A * D, A * H)),
            _const_spec((A * H, A * D)),
            _const_spec((H, D)),
        ],
        out_specs=tuple(attn_out_specs),
        compiler_params=pltpu.CompilerParams(
            dimension_semantics=("parallel",),
            vmem_limit_bytes=_limit(est_attn)),
    )(qkv, x, er_bd, hsum_all, hbc_all, head_bcast)
    x1 = attn_res[0]
    sa = attn_res[1] if return_sa else None

    # ---- LN2 + FFN + residual (row-tiled, weights resident) ----------------
    est_ffn = (4 * TM * D * 4 + 2 * (D * F_dim + F_dim * D) * mm_b
               + (2 * F_dim + 6 * D) * 4 + 2 * TM * F_dim * 4 + TM * D * 4)
    out = pl.pallas_call(
        functools.partial(_ln_ffn_kernel, eps=layer_norm_eps),
        out_shape=jax.ShapeDtypeStruct((N, D), jnp.float32),
        grid=(n_row_blocks,),
        in_specs=[
            pl.BlockSpec((TM, D), lambda i: (i, 0)),
            _const_spec((1, D)),
            _const_spec((1, D)),
            _const_spec((D, F_dim)),
            _const_spec((1, F_dim)),
            _const_spec((F_dim, D)),
            _const_spec((1, D)),
        ],
        out_specs=pl.BlockSpec((TM, D), lambda i: (i, 0)),
        compiler_params=pltpu.CompilerParams(
            dimension_semantics=("parallel",),
            vmem_limit_bytes=_limit(est_ffn)),
    )(x1.reshape(N, D), params["g2"].reshape(1, D), params["be2"].reshape(1, D),
      w1, params["b1"].reshape(1, F_dim),
      w2, params["b2"].reshape(1, D)).reshape(B, T, D)

    return out, sa


# ---------------------------------------------------------------------------
# Parameters + pure-JAX reference (for an in-script sanity check)
# ---------------------------------------------------------------------------
def init_params(key, d_model, nhead, dim_ff, left_attn_len):
    hd = d_model // nhead
    A = left_attn_len + 1
    ks = jax.random.split(key, 9)
    s = 0.1
    wq = jax.random.normal(ks[0], (d_model, d_model), jnp.float32) * s
    bq = jax.random.normal(ks[1], (d_model,), jnp.float32) * s
    wk = jax.random.normal(ks[2], (d_model, d_model), jnp.float32) * s
    bk = jax.random.normal(ks[3], (d_model,), jnp.float32) * s
    wv = jax.random.normal(ks[4], (d_model, d_model), jnp.float32) * s
    bv = jax.random.normal(ks[5], (d_model,), jnp.float32) * s
    return dict(
        wqkv=jnp.concatenate([wq, wk, wv], axis=1),            # fused (D, 3D)
        bqkv=jnp.concatenate([bq, bk, bv]),                    # (3D,)
        er=jax.random.normal(ks[6], (nhead, hd, A), jnp.float32),
        w1=jax.random.normal(ks[7], (d_model, dim_ff), jnp.float32) * s,
        b1=jnp.zeros((dim_ff,), jnp.float32),
        w2=jax.random.normal(ks[8], (dim_ff, d_model), jnp.float32) * s,
        b2=jnp.zeros((d_model,), jnp.float32),
        g1=jnp.ones((d_model,), jnp.float32),
        be1=jnp.zeros((d_model,), jnp.float32),
        g2=jnp.ones((d_model,), jnp.float32),
        be2=jnp.zeros((d_model,), jnp.float32),
    )


def _reference_forward(x, params, *, nhead, left_attn_len, latency, layer, eps=1e-5):
    """Pure-JAX transcription of the PyTorch module (norm_first=True path)."""
    B, T, D = x.shape
    H, hd = nhead, D // nhead
    hp = jax.lax.Precision.HIGHEST

    def ln(z, g, b):
        m = jnp.mean(z, -1, keepdims=True)
        v = jnp.mean(jnp.square(z - m), -1, keepdims=True)
        return (z - m) * jax.lax.rsqrt(v + eps) * g + b

    xn = ln(x, params["g1"], params["be1"])
    qkv = jnp.einsum("btd,de->bte", xn, params["wqkv"], precision=hp) + params["bqkv"]
    q, k, v = jnp.split(qkv, 3, axis=-1)
    heads = lambda z: z.reshape(B, T, H, hd).transpose(0, 2, 1, 3)     # (B,H,T,hd)
    q, k, v = heads(q), heads(k), heads(v)

    shifts = [-round((1 + layer) / 11 * latency)] + [j * 2 ** layer for j in range(left_attn_len)]
    pad = 2 ** layer * (left_attn_len - 1)

    def kv_roll(z):
        zp = jnp.pad(z[:, :, :, None, :], ((0, 0), (0, 0), (0, pad), (0, 0), (0, 0)))
        r = jnp.concatenate([jnp.roll(zp, si, axis=2) for si in shifts], axis=-2)
        return r[:, :, :T]                                              # (B,H,T,A,hd)

    kr, vr = kv_roll(k), kv_roll(v)
    qk = jnp.einsum("bhtd,bhtad->bhta", q, kr, precision=hp)
    rel = jnp.einsum("bhtd,hda->bhta", q, params["er"], precision=hp)
    mask = jnp.where(qk == 0.0, 1e-9, 0.0)
    attn = jax.nn.softmax((qk + rel) / math.sqrt(hd) + mask, axis=-1)
    sa = jnp.einsum("bhta,bhtad->bhtd", attn, vr, precision=hp)
    sa = sa.transpose(0, 2, 1, 3).reshape(B, T, D)

    x1 = x + sa
    xn2 = ln(x1, params["g2"], params["be2"])
    h = jnp.einsum("btd,df->btf", xn2, params["w1"], precision=hp) + params["b1"]
    h = 0.5 * h * (1.0 + jax.lax.erf(h * 0.7071067811865476))
    ff = jnp.einsum("btf,fd->btd", h, params["w2"], precision=hp) + params["b2"]
    return x1 + ff, sa


if __name__ == "__main__":
    B, T, D, H, FF, ATTN_LEN, LATENCY = 2, 16, 32, 4, 64, 5, 10
    key = jax.random.PRNGKey(0)
    kx, kp_ = jax.random.split(key)
    x = jax.random.normal(kx, (B, T, D), jnp.float32)
    params = init_params(kp_, D, H, FF, ATTN_LEN)

    ref_out, ref_sa = _reference_forward(
        x, params, nhead=H, left_attn_len=ATTN_LEN, latency=LATENCY, layer=0)

    # f32-matmul path: tight correctness check of the kernel / window indexing.
    fwd_f32 = jax.jit(functools.partial(
        dilated_transformer_layer, nhead=H, left_attn_len=ATTN_LEN,
        latency=LATENCY, layer=0, matmul_dtype=jnp.float32))
    out32, sa32 = fwd_f32(x, params)
    jax.block_until_ready(out32)
    jax.block_until_ready(sa32)
    assert out32.shape == (B, T, D) and out32.dtype == jnp.float32
    assert sa32.shape == (B, T, D)
    assert bool(jnp.all(jnp.isfinite(out32)))
    assert float(jnp.max(jnp.abs(out32 - ref_out))) < 2e-2
    assert float(jnp.max(jnp.abs(sa32 - ref_sa))) < 2e-2

    # default bf16-matmul path (MXU-native, f32 accumulation): looser check.
    fwd = jax.jit(functools.partial(
        dilated_transformer_layer, nhead=H, left_attn_len=ATTN_LEN,
        latency=LATENCY, layer=0))
    out, x_sa = fwd(x, params)
    jax.block_until_ready(out)
    jax.block_until_ready(x_sa)
    assert out.shape == (B, T, D) and out.dtype == jnp.float32
    assert x_sa.shape == (B, T, D)
    assert bool(jnp.all(jnp.isfinite(out)))
    assert float(jnp.max(jnp.abs(out - ref_out))) < 1e-1
    assert float(jnp.max(jnp.abs(x_sa - ref_sa))) < 1e-1

    print("KERNEL_OK")
</pallas_src>

<mosaic_0001>
module attributes {stable_mosaic.version = 11 : i64} {
  func.func @_ln_qkv_kernel(%arg0: i32, %arg1: memref<32x32xf32, #tpu.memory_space<vmem>>, %arg2: memref<1x32xf32, #tpu.memory_space<vmem>>, %arg3: memref<1x32xf32, #tpu.memory_space<vmem>>, %arg4: memref<32x96xf32, #tpu.memory_space<vmem>>, %arg5: memref<1x96xf32, #tpu.memory_space<vmem>>, %arg6: memref<32x96xf32, #tpu.memory_space<vmem>>) attributes {dimension_semantics = [#tpu.dimension_semantics<parallel>], iteration_bounds = array<i64: 1>, scalar_prefetch = 0 : i64, scratch_operands = 0 : i64, tpu.core_type = #tpu.core_type<tc>, window_params = [{transform_indices = @transform_0, window_bounds = array<i64: 32, 32>}, {pipeline_mode = #tpu.pipeline_mode<synchronous>, transform_indices = @transform_1, window_bounds = array<i64: 1, 32>}, {pipeline_mode = #tpu.pipeline_mode<synchronous>, transform_indices = @transform_2, window_bounds = array<i64: 1, 32>}, {pipeline_mode = #tpu.pipeline_mode<synchronous>, transform_indices = @transform_3, window_bounds = array<i64: 32, 96>}, {pipeline_mode = #tpu.pipeline_mode<synchronous>, transform_indices = @transform_4, window_bounds = array<i64: 1, 96>}, {transform_indices = @transform_5, window_bounds = array<i64: 32, 96>}]} {
    %c0 = arith.constant 0 : index
    %c0_0 = arith.constant 0 : index
    %0 = vector.load %arg1[%c0, %c0_0] : memref<32x32xf32, #tpu.memory_space<vmem>>, vector<32x32xf32>
    %cst = arith.constant dense<0.000000e+00> : vector<32xf32>
    %1 = vector.multi_reduction <add>, %0, %cst [1] : vector<32x32xf32> to vector<32xf32>
    %2 = vector.shape_cast %1 : vector<32xf32> to vector<32x1xf32>
    %cst_1 = arith.constant 3.200000e+01 : f32
    %3 = vector.broadcast %cst_1 : f32 to vector<32x1xf32>
    %4 = arith.divf %2, %3 : vector<32x1xf32>
    %5 = vector.broadcast %4 : vector<32x1xf32> to vector<32x32xf32>
    %6 = arith.subf %0, %5 : vector<32x32xf32>
    %7 = arith.mulf %6, %6 : vector<32x32xf32>
    %cst_2 = arith.constant dense<0.000000e+00> : vector<32xf32>
    %8 = vector.multi_reduction <add>, %7, %cst_2 [1] : vector<32x32xf32> to vector<32xf32>
    %9 = vector.shape_cast %8 : vector<32xf32> to vector<32x1xf32>
    %cst_3 = arith.constant 3.200000e+01 : f32
    %10 = vector.broadcast %cst_3 : f32 to vector<32x1xf32>
    %11 = arith.divf %9, %10 : vector<32x1xf32>
    %12 = vector.broadcast %4 : vector<32x1xf32> to vector<32x32xf32>
    %13 = arith.subf %0, %12 : vector<32x32xf32>
    %cst_4 = arith.constant 9.99999974E-6 : f32
    %14 = vector.broadcast %cst_4 : f32 to vector<32x1xf32>
    %15 = arith.addf %11, %14 : vector<32x1xf32>
    %16 = math.rsqrt %15 : vector<32x1xf32>
    %17 = vector.broadcast %16 : vector<32x1xf32> to vector<32x32xf32>
    %18 = arith.mulf %13, %17 : vector<32x32xf32>
    %c0_5 = arith.constant 0 : index
    %c0_6 = arith.constant 0 : index
    %19 = vector.load %arg2[%c0_5, %c0_6] : memref<1x32xf32, #tpu.memory_space<vmem>>, vector<1x32xf32>
    %20 = vector.broadcast %19 : vector<1x32xf32> to vector<32x32xf32>
    %21 = arith.mulf %18, %20 : vector<32x32xf32>
    %c0_7 = arith.constant 0 : index
    %c0_8 = arith.constant 0 : index
    %22 = vector.load %arg3[%c0_7, %c0_8] : memref<1x32xf32, #tpu.memory_space<vmem>>, vector<1x32xf32>
    %23 = vector.broadcast %22 : vector<1x32xf32> to vector<32x32xf32>
    %24 = arith.addf %21, %23 : vector<32x32xf32>
    %c0_9 = arith.constant 0 : index
    %c0_10 = arith.constant 0 : index
    %25 = vector.load %arg4[%c0_9, %c0_10] : memref<32x96xf32, #tpu.memory_space<vmem>>, vector<32x96xf32>
    %cst_11 = arith.constant dense<0.000000e+00> : vector<32x96xf32>
    %26 = tpu.matmul %24, %25, %cst_11 {dimension_numbers = #tpu.dot_dimension_numbers<[1], [0], [0], [1], [0, 0, 1, 1], [], []>} : vector<32x32xf32>, vector<32x96xf32>, vector<32x96xf32> -> vector<32x96xf32>
    %c0_12 = arith.constant 0 : index
    %c0_13 = arith.constant 0 : index
    %27 = vector.load %arg5[%c0_12, %c0_13] : memref<1x96xf32, #tpu.memory_space<vmem>>, vector<1x96xf32>
    %28 = vector.broadcast %27 : vector<1x96xf32> to vector<32x96xf32>
    %29 = arith.addf %26, %28 : vector<32x96xf32>
    %c0_14 = arith.constant 0 : index
    %c0_15 = arith.constant 0 : index
    %30 = vector.load %arg6[%c0_14, %c0_15] : memref<32x96xf32, #tpu.memory_space<vmem>>, vector<32x96xf32>
    tpu.vector_store %arg6[%c0_14, %c0_15], %29 {strides = array<i32>} : memref<32x96xf32, #tpu.memory_space<vmem>>, vector<32x96xf32>,
    return
  }
  func.func @transform_0(%arg0: i32) -> (i32, i32) {
    %c0_i32 = arith.constant 0 : i32
    %c0_i32_0 = arith.constant 0 : i32
    return %arg0, %c0_i32 : i32, i32
  }
  func.func @transform_1(%arg0: i32) -> (i32, i32) {
    %c0_i32 = arith.constant 0 : i32
    %c0_i32_0 = arith.constant 0 : i32
    %c0_i32_1 = arith.constant 0 : i32
    return %c0_i32, %c0_i32_0 : i32, i32
  }
  func.func @transform_2(%arg0: i32) -> (i32, i32) {
    %c0_i32 = arith.constant 0 : i32
    %c0_i32_0 = arith.constant 0 : i32
    %c0_i32_1 = arith.constant 0 : i32
    return %c0_i32, %c0_i32_0 : i32, i32
  }
  func.func @transform_3(%arg0: i32) -> (i32, i32) {
    %c0_i32 = arith.constant 0 : i32
    %c0_i32_0 = arith.constant 0 : i32
    %c0_i32_1 = arith.constant 0 : i32
    return %c0_i32, %c0_i32_0 : i32, i32
  }
  func.func @transform_4(%arg0: i32) -> (i32, i32) {
    %c0_i32 = arith.constant 0 : i32
    %c0_i32_0 = arith.constant 0 : i32
    %c0_i32_1 = arith.constant 0 : i32
    return %c0_i32, %c0_i32_0 : i32, i32
  }
  func.func @transform_5(%arg0: i32) -> (i32, i32) {
    %c0_i32 = arith.constant 0 : i32
    %c0_i32_0 = arith.constant 0 : i32
    return %arg0, %c0_i32 : i32, i32
  }
}

module attributes {stable_mosaic.version = 11 : i64} {
  func.func @_ln_ffn_kernel(%arg0: i32, %arg1: memref<32x32xf32, #tpu.memory_space<vmem>>, %arg2: memref<1x32xf32, #tpu.memory_space<vmem>>, %arg3: memref<1x32xf32, #tpu.memory_space<vmem>>, %arg4: memref<32x64xf32, #tpu.memory_space<vmem>>, %arg5: memref<1x64xf32, #tpu.memory_space<vmem>>, %arg6: memref<64x32xf32, #tpu.memory_space<vmem>>, %arg7: memref<1x32xf32, #tpu.memory_space<vmem>>, %arg8: memref<32x32xf32, #tpu.memory_space<vmem>>) attributes {dimension_semantics = [#tpu.dimension_semantics<parallel>], iteration_bounds = array<i64: 1>, scalar_prefetch = 0 : i64, scratch_operands = 0 : i64, tpu.core_type = #tpu.core_type<tc>, window_params = [{transform_indices = @transform_0, window_bounds = array<i64: 32, 32>}, {pipeline_mode = #tpu.pipeline_mode<synchronous>, transform_indices = @transform_1, window_bounds = array<i64: 1, 32>}, {pipeline_mode = #tpu.pipeline_mode<synchronous>, transform_indices = @transform_2, window_bounds = array<i64: 1, 32>}, {pipeline_mode = #tpu.pipeline_mode<synchronous>, transform_indices = @transform_3, window_bounds = array<i64: 32, 64>}, {pipeline_mode = #tpu.pipeline_mode<synchronous>, transform_indices = @transform_4, window_bounds = array<i64: 1, 64>}, {pipeline_mode = #tpu.pipeline_mode<synchronous>, transform_indices = @transform_5, window_bounds = array<i64: 64, 32>}, {pipeline_mode = #tpu.pipeline_mode<synchronous>, transform_indices = @transform_6, window_bounds = array<i64: 1, 32>}, {transform_indices = @transform_7, window_bounds = array<i64: 32, 32>}]} {
    %c0 = arith.constant 0 : index
    %c0_0 = arith.constant 0 : index
    %0 = vector.load %arg1[%c0, %c0_0] : memref<32x32xf32, #tpu.memory_space<vmem>>, vector<32x32xf32>
    %cst = arith.constant dense<0.000000e+00> : vector<32xf32>
    %1 = vector.multi_reduction <add>, %0, %cst [1] : vector<32x32xf32> to vector<32xf32>
    %2 = vector.shape_cast %1 : vector<32xf32> to vector<32x1xf32>
    %cst_1 = arith.constant 3.200000e+01 : f32
    %3 = vector.broadcast %cst_1 : f32 to vector<32x1xf32>
    %4 = arith.divf %2, %3 : vector<32x1xf32>
    %5 = vector.broadcast %4 : vector<32x1xf32> to vector<32x32xf32>
    %6 = arith.subf %0, %5 : vector<32x32xf32>
    %7 = arith.mulf %6, %6 : vector<32x32xf32>
    %cst_2 = arith.constant dense<0.000000e+00> : vector<32xf32>
    %8 = vector.multi_reduction <add>, %7, %cst_2 [1] : vector<32x32xf32> to vector<32xf32>
    %9 = vector.shape_cast %8 : vector<32xf32> to vector<32x1xf32>
    %cst_3 = arith.constant 3.200000e+01 : f32
    %10 = vector.broadcast %cst_3 : f32 to vector<32x1xf32>
    %11 = arith.divf %9, %10 : vector<32x1xf32>
    %12 = vector.broadcast %4 : vector<32x1xf32> to vector<32x32xf32>
    %13 = arith.subf %0, %12 : vector<32x32xf32>
    %cst_4 = arith.constant 9.99999974E-6 : f32
    %14 = vector.broadcast %cst_4 : f32 to vector<32x1xf32>
    %15 = arith.addf %11, %14 : vector<32x1xf32>
    %16 = math.rsqrt %15 : vector<32x1xf32>
    %17 = vector.broadcast %16 : vector<32x1xf32> to vector<32x32xf32>
    %18 = arith.mulf %13, %17 : vector<32x32xf32>
    %c0_5 = arith.constant 0 : index
    %c0_6 = arith.constant 0 : index
    %19 = vector.load %arg2[%c0_5, %c0_6] : memref<1x32xf32, #tpu.memory_space<vmem>>, vector<1x32xf32>
    %20 = vector.broadcast %19 : vector<1x32xf32> to vector<32x32xf32>
    %21 = arith.mulf %18, %20 : vector<32x32xf32>
    %c0_7 = arith.constant 0 : index
    %c0_8 = arith.constant 0 : index
    %22 = vector.load %arg3[%c0_7, %c0_8] : memref<1x32xf32, #tpu.memory_space<vmem>>, vector<1x32xf32>
    %23 = vector.broadcast %22 : vector<1x32xf32> to vector<32x32xf32>
    %24 = arith.addf %21, %23 : vector<32x32xf32>
    %c0_9 = arith.constant 0 : index
    %c0_10 = arith.constant 0 : index
    %25 = vector.load %arg4[%c0_9, %c0_10] : memref<32x64xf32, #tpu.memory_space<vmem>>, vector<32x64xf32>
    %cst_11 = arith.constant dense<0.000000e+00> : vector<32x64xf32>
    %26 = tpu.matmul %24, %25, %cst_11 {dimension_numbers = #tpu.dot_dimension_numbers<[1], [0], [0], [1], [0, 0, 1, 1], [], []>} : vector<32x32xf32>, vector<32x64xf32>, vector<32x64xf32> -> vector<32x64xf32>
    %c0_12 = arith.constant 0 : index
    %c0_13 = arith.constant 0 : index
    %27 = vector.load %arg5[%c0_12, %c0_13] : memref<1x64xf32, #tpu.memory_space<vmem>>, vector<1x64xf32>
    %28 = vector.broadcast %27 : vector<1x64xf32> to vector<32x64xf32>
    %29 = arith.addf %26, %28 : vector<32x64xf32>
    %cst_14 = arith.constant 5.000000e-01 : f32
    %30 = vector.broadcast %cst_14 : f32 to vector<32x64xf32>
    %31 = arith.mulf %30, %29 : vector<32x64xf32>
    %cst_15 = arith.constant 0.707106769 : f32
    %32 = vector.broadcast %cst_15 : f32 to vector<32x64xf32>
    %33 = arith.mulf %29, %32 : vector<32x64xf32>
    %34 = math.erf %33 : vector<32x64xf32>
    %cst_16 = arith.constant 1.000000e+00 : f32
    %35 = vector.broadcast %cst_16 : f32 to vector<32x64xf32>
    %36 = arith.addf %35, %34 : vector<32x64xf32>
    %37 = arith.mulf %31, %36 : vector<32x64xf32>
    %c0_17 = arith.constant 0 : index
    %c0_18 = arith.constant 0 : index
    %38 = vector.load %arg6[%c0_17, %c0_18] : memref<64x32xf32, #tpu.memory_space<vmem>>, vector<64x32xf32>
    %cst_19 = arith.constant dense<0.000000e+00> : vector<32x32xf32>
    %39 = tpu.matmul %37, %38, %cst_19 {dimension_numbers = #tpu.dot_dimension_numbers<[1], [0], [0], [1], [0, 0, 1, 1], [], []>} : vector<32x64xf32>, vector<64x32xf32>, vector<32x32xf32> -> vector<32x32xf32>
    %c0_20 = arith.constant 0 : index
    %c0_21 = arith.constant 0 : index
    %40 = vector.load %arg7[%c0_20, %c0_21] : memref<1x32xf32, #tpu.memory_space<vmem>>, vector<1x32xf32>
    %41 = vector.broadcast %40 : vector<1x32xf32> to vector<32x32xf32>
    %42 = arith.addf %39, %41 : vector<32x32xf32>
    %43 = arith.addf %0, %42 : vector<32x32xf32>
    %c0_22 = arith.constant 0 : index
    %c0_23 = arith.constant 0 : index
    %44 = vector.load %arg8[%c0_22, %c0_23] : memref<32x32xf32, #tpu.memory_space<vmem>>, vector<32x32xf32>
    tpu.vector_store %arg8[%c0_22, %c0_23], %43 {strides = array<i32>} : memref<32x32xf32, #tpu.memory_space<vmem>>, vector<32x32xf32>,
    return
  }
  func.func @transform_0(%arg0: i32) -> (i32, i32) {
    %c0_i32 = arith.constant 0 : i32
    %c0_i32_0 = arith.constant 0 : i32
    return %arg0, %c0_i32 : i32, i32
  }
  func.func @transform_1(%arg0: i32) -> (i32, i32) {
    %c0_i32 = arith.constant 0 : i32
    %c0_i32_0 = arith.constant 0 : i32
    %c0_i32_1 = arith.constant 0 : i32
    return %c0_i32, %c0_i32_0 : i32, i32
  }
  func.func @transform_2(%arg0: i32) -> (i32, i32) {
    %c0_i32 = arith.constant 0 : i32
    %c0_i32_0 = arith.constant 0 : i32
    %c0_i32_1 = arith.constant 0 : i32
    return %c0_i32, %c0_i32_0 : i32, i32
  }
  func.func @transform_3(%arg0: i32) -> (i32, i32) {
    %c0_i32 = arith.constant 0 : i32
    %c0_i32_0 = arith.constant 0 : i32
    %c0_i32_1 = arith.constant 0 : i32
    return %c0_i32, %c0_i32_0 : i32, i32
  }
  func.func @transform_4(%arg0: i32) -> (i32, i32) {
    %c0_i32 = arith.constant 0 : i32
    %c0_i32_0 = arith.constant 0 : i32
    %c0_i32_1 = arith.constant 0 : i32
    return %c0_i32, %c0_i32_0 : i32, i32
  }
  func.func @transform_5(%arg0: i32) -> (i32, i32) {
    %c0_i32 = arith.constant 0 : i32
    %c0_i32_0 = arith.constant 0 : i32
    %c0_i32_1 = arith.constant 0 : i32
    return %c0_i32, %c0_i32_0 : i32, i32
  }
  func.func @transform_6(%arg0: i32) -> (i32, i32) {
    %c0_i32 = arith.constant 0 : i32
    %c0_i32_0 = arith.constant 0 : i32
    %c0_i32_1 = arith.constant 0 : i32
    return %c0_i32, %c0_i32_0 : i32, i32
  }
  func.func @transform_7(%arg0: i32) -> (i32, i32) {
    %c0_i32 = arith.constant 0 : i32
    %c0_i32_0 = arith.constant 0 : i32
    return %arg0, %c0_i32 : i32, i32
  }
}

module attributes {stable_mosaic.version = 11 : i64} {
  func.func @_attn_kernel(%arg0: i32, %arg1: memref<1x16x96xf32, #tpu.memory_space<vmem>>, %arg2: memref<1x16x32xf32, #tpu.memory_space<vmem>>, %arg3: memref<32x24xf32, #tpu.memory_space<vmem>>, %arg4: memref<192x24xf32, #tpu.memory_space<vmem>>, %arg5: memref<24x192xf32, #tpu.memory_space<vmem>>, %arg6: memref<4x32xf32, #tpu.memory_space<vmem>>, %arg7: memref<1x16x32xf32, #tpu.memory_space<vmem>>, %arg8: memref<1x16x32xf32, #tpu.memory_space<vmem>>) attributes {dimension_semantics = [#tpu.dimension_semantics<parallel>], iteration_bounds = array<i64: 2>, scalar_prefetch = 0 : i64, scratch_operands = 0 : i64, tpu.core_type = #tpu.core_type<tc>, window_params = [{transform_indices = @transform_0, window_bounds = array<i64: 1, 16, 96>}, {transform_indices = @transform_1, window_bounds = array<i64: 1, 16, 32>}, {pipeline_mode = #tpu.pipeline_mode<synchronous>, transform_indices = @transform_2, window_bounds = array<i64: 32, 24>}, {pipeline_mode = #tpu.pipeline_mode<synchronous>, transform_indices = @transform_3, window_bounds = array<i64: 192, 24>}, {pipeline_mode = #tpu.pipeline_mode<synchronous>, transform_indices = @transform_4, window_bounds = array<i64: 24, 192>}, {pipeline_mode = #tpu.pipeline_mode<synchronous>, transform_indices = @transform_5, window_bounds = array<i64: 4, 32>}, {transform_indices = @transform_6, window_bounds = array<i64: 1, 16, 32>}, {transform_indices = @transform_7, window_bounds = array<i64: 1, 16, 32>}]} {
    %c0 = arith.constant 0 : index
    %c0_0 = arith.constant 0 : index
    %c0_1 = arith.constant 0 : index
    %0 = vector.load %arg1[%c0, %c0_0, %c0_1] : memref<1x16x96xf32, #tpu.memory_space<vmem>>, vector<1x16x96xf32>
    %1 = vector.shape_cast %0 : vector<1x16x96xf32> to vector<16x96xf32>
    %2 = vector.extract_strided_slice %1 {offsets = [0, 0], sizes = [16, 32], strides = [1, 1]} : vector<16x96xf32> to vector<16x32xf32>
    %3 = vector.extract_strided_slice %1 {offsets = [0, 32], sizes = [16, 32], strides = [1, 1]} : vector<16x96xf32> to vector<16x32xf32>
    %4 = vector.extract_strided_slice %1 {offsets = [0, 64], sizes = [16, 32], strides = [1, 1]} : vector<16x96xf32> to vector<16x32xf32>
    %c0_2 = arith.constant 0 : index
    %c0_3 = arith.constant 0 : index
    %5 = vector.load %arg3[%c0_2, %c0_3] : memref<32x24xf32, #tpu.memory_space<vmem>>, vector<32x24xf32>
    %cst = arith.constant dense<0.000000e+00> : vector<16x24xf32>
    %6 = tpu.matmul %2, %5, %cst {dimension_numbers = #tpu.dot_dimension_numbers<[1], [0], [0], [1], [0, 0, 1, 1], [], []>} : vector<16x32xf32>, vector<32x24xf32>, vector<16x24xf32> -> vector<16x24xf32>
    %cst_4 = arith.constant 0.000000e+00 : f32
    %7 = vector.broadcast %cst_4 : f32 to vector<4x32xf32>
    %8 = tpu.concatenate %3, %7 in 0 : vector<16x32xf32>, vector<4x32xf32> -> vector<20x32xf32>
    %9 = tpu.concatenate %4, %7 in 0 : vector<16x32xf32>, vector<4x32xf32> -> vector<20x32xf32>
    %10 = vector.extract_strided_slice %8 {offsets = [1, 0], sizes = [16, 32], strides = [1, 1]} : vector<20x32xf32> to vector<16x32xf32>
    %11 = arith.mulf %2, %10 : vector<16x32xf32>
    %12 = vector.extract_strided_slice %8 {offsets = [0, 0], sizes = [16, 32], strides = [1, 1]} : vector<20x32xf32> to vector<16x32xf32>
    %13 = arith.mulf %2, %12 : vector<16x32xf32>
    %14 = vector.extract_strided_slice %8 {offsets = [19, 0], sizes = [1, 32], strides = [1, 1]} : vector<20x32xf32> to vector<1x32xf32>
    %15 = vector.extract_strided_slice %8 {offsets = [0, 0], sizes = [15, 32], strides = [1, 1]} : vector<20x32xf32> to vector<15x32xf32>
    %16 = tpu.concatenate %14, %15 in 0 : vector<1x32xf32>, vector<15x32xf32> -> vector<16x32xf32>
    %17 = arith.mulf %2, %16 : vector<16x32xf32>
    %18 = vector.extract_strided_slice %8 {offsets = [18, 0], sizes = [2, 32], strides = [1, 1]} : vector<20x32xf32> to vector<2x32xf32>
    %19 = vector.extract_strided_slice %8 {offsets = [0, 0], sizes = [14, 32], strides = [1, 1]} : vector<20x32xf32> to vector<14x32xf32>
    %20 = tpu.concatenate %18, %19 in 0 : vector<2x32xf32>, vector<14x32xf32> -> vector<16x32xf32>
    %21 = arith.mulf %2, %20 : vector<16x32xf32>
    %22 = vector.extract_strided_slice %8 {offsets = [17, 0], sizes = [3, 32], strides = [1, 1]} : vector<20x32xf32> to vector<3x32xf32>
    %23 = vector.extract_strided_slice %8 {offsets = [0, 0], sizes = [13, 32], strides = [1, 1]} : vector<20x32xf32> to vector<13x32xf32>
    %24 = tpu.concatenate %22, %23 in 0 : vector<3x32xf32>, vector<13x32xf32> -> vector<16x32xf32>
    %25 = arith.mulf %2, %24 : vector<16x32xf32>
    %26 = vector.extract_strided_slice %8 {offsets = [16, 0], sizes = [4, 32], strides = [1, 1]} : vector<20x32xf32> to vector<4x32xf32>
    %27 = vector.extract_strided_slice %8 {offsets = [0, 0], sizes = [12, 32], strides = [1, 1]} : vector<20x32xf32> to vector<12x32xf32>
    %28 = tpu.concatenate %26, %27 in 0 : vector<4x32xf32>, vector<12x32xf32> -> vector<16x32xf32>
    %29 = arith.mulf %2, %28 : vector<16x32xf32>
    %30 = tpu.concatenate %11, %13, %17, %21, %25, %29 in 1 : vector<16x32xf32>, vector<16x32xf32>, vector<16x32xf32>, vector<16x32xf32>, vector<16x32xf32>, vector<16x32xf32> -> vector<16x192xf32>
    %c0_5 = arith.constant 0 : index
    %c0_6 = arith.constant 0 : index
    %31 = vector.load %arg4[%c0_5, %c0_6] : memref<192x24xf32, #tpu.memory_space<vmem>>, vector<192x24xf32>
    %cst_7 = arith.constant dense<0.000000e+00> : vector<16x24xf32>
    %32 = tpu.matmul %30, %31, %cst_7 {dimension_numbers = #tpu.dot_dimension_numbers<[1], [0], [0], [1], [0, 0, 1, 1], [], []>} : vector<16x192xf32>, vector<192x24xf32>, vector<16x24xf32> -> vector<16x24xf32>
    %cst_8 = arith.constant 0.000000e+00 : f32
    %33 = vector.broadcast %cst_8 : f32 to vector<16x24xf32>
    %34 = arith.cmpf oeq, %32, %33 : vector<16x24xf32>
    %cst_9 = arith.constant 9.99999971E-10 : f32
    %cst_10 = arith.constant 0.000000e+00 : f32
    %35 = vector.broadcast %cst_9 : f32 to vector<16x24xf32>
    %36 = vector.broadcast %cst_10 : f32 to vector<16x24xf32>
    %37 = arith.select %34, %35, %36 : vector<16x24xi1>, vector<16x24xf32>
    %38 = arith.addf %32, %6 : vector<16x24xf32>
    %cst_11 = arith.constant 0.353553385 : f32
    %39 = vector.broadcast %cst_11 : f32 to vector<16x24xf32>
    %40 = arith.mulf %38, %39 : vector<16x24xf32>
    %41 = arith.addf %40, %37 : vector<16x24xf32>
    %42 = vector.extract_strided_slice %41 {offsets = [0, 0], sizes = [16, 4], strides = [1, 1]} : vector<16x24xf32> to vector<16x4xf32>
    %43 = vector.extract_strided_slice %41 {offsets = [0, 4], sizes = [16, 4], strides = [1, 1]} : vector<16x24xf32> to vector<16x4xf32>
    %44 = arith.maximumf %42, %43 : vector<16x4xf32>
    %45 = vector.extract_strided_slice %41 {offsets = [0, 8], sizes = [16, 4], strides = [1, 1]} : vector<16x24xf32> to vector<16x4xf32>
    %46 = arith.maximumf %44, %45 : vector<16x4xf32>
    %47 = vector.extract_strided_slice %41 {offsets = [0, 12], sizes = [16, 4], strides = [1, 1]} : vector<16x24xf32> to vector<16x4xf32>
    %48 = arith.maximumf %46, %47 : vector<16x4xf32>
    %49 = vector.extract_strided_slice %41 {offsets = [0, 16], sizes = [16, 4], strides = [1, 1]} : vector<16x24xf32> to vector<16x4xf32>
    %50 = arith.maximumf %48, %49 : vector<16x4xf32>
    %51 = vector.extract_strided_slice %41 {offsets = [0, 20], sizes = [16, 4], strides = [1, 1]} : vector<16x24xf32> to vector<16x4xf32>
    %52 = arith.maximumf %50, %51 : vector<16x4xf32>
    %53 = tpu.concatenate %52, %52, %52, %52, %52, %52 in 1 : vector<16x4xf32>, vector<16x4xf32>, vector<16x4xf32>, vector<16x4xf32>, vector<16x4xf32>, vector<16x4xf32> -> vector<16x24xf32>
    %54 = arith.subf %41, %53 : vector<16x24xf32>
    %55 = math.exp %54 : vector<16x24xf32>
    %56 = vector.extract_strided_slice %55 {offsets = [0, 0], sizes = [16, 4], strides = [1, 1]} : vector<16x24xf32> to vector<16x4xf32>
    %57 = vector.extract_strided_slice %55 {offsets = [0, 4], sizes = [16, 4], strides = [1, 1]} : vector<16x24xf32> to vector<16x4xf32>
    %58 = arith.addf %56, %57 : vector<16x4xf32>
    %59 = vector.extract_strided_slice %55 {offsets = [0, 8], sizes = [16, 4], strides = [1, 1]} : vector<16x24xf32> to vector<16x4xf32>
    %60 = arith.addf %58, %59 : vector<16x4xf32>
    %61 = vector.extract_strided_slice %55 {offsets = [0, 12], sizes = [16, 4], strides = [1, 1]} : vector<16x24xf32> to vector<16x4xf32>
    %62 = arith.addf %60, %61 : vector<16x4xf32>
    %63 = vector.extract_strided_slice %55 {offsets = [0, 16], sizes = [16, 4], strides = [1, 1]} : vector<16x24xf32> to vector<16x4xf32>
    %64 = arith.addf %62, %63 : vector<16x4xf32>
    %65 = vector.extract_strided_slice %55 {offsets = [0, 20], sizes = [16, 4], strides = [1, 1]} : vector<16x24xf32> to vector<16x4xf32>
    %66 = arith.addf %64, %65 : vector<16x4xf32>
    %c0_12 = arith.constant 0 : index
    %c0_13 = arith.constant 0 : index
    %67 = vector.load %arg5[%c0_12, %c0_13] : memref<24x192xf32, #tpu.memory_space<vmem>>, vector<24x192xf32>
    %cst_14 = arith.constant dense<0.000000e+00> : vector<16x192xf32>
    %68 = tpu.matmul %55, %67, %cst_14 {dimension_numbers = #tpu.dot_dimension_numbers<[1], [0], [0], [1], [0, 0, 1, 1], [], []>} : vector<16x24xf32>, vector<24x192xf32>, vector<16x192xf32> -> vector<16x192xf32>
    %69 = vector.extract_strided_slice %9 {offsets = [1, 0], sizes = [16, 32], strides = [1, 1]} : vector<20x32xf32> to vector<16x32xf32>
    %70 = vector.extract_strided_slice %9 {offsets = [0, 0], sizes = [16, 32], strides = [1, 1]} : vector<20x32xf32> to vector<16x32xf32>
    %71 = vector.extract_strided_slice %9 {offsets = [19, 0], sizes = [1, 32], strides = [1, 1]} : vector<20x32xf32> to vector<1x32xf32>
    %72 = vector.extract_strided_slice %9 {offsets = [0, 0], sizes = [15, 32], strides = [1, 1]} : vector<20x32xf32> to vector<15x32xf32>
    %73 = tpu.concatenate %71, %72 in 0 : vector<1x32xf32>, vector<15x32xf32> -> vector<16x32xf32>
    %74 = vector.extract_strided_slice %9 {offsets = [18, 0], sizes = [2, 32], strides = [1, 1]} : vector<20x32xf32> to vector<2x32xf32>
    %75 = vector.extract_strided_slice %9 {offsets = [0, 0], sizes = [14, 32], strides = [1, 1]} : vector<20x32xf32> to vector<14x32xf32>
    %76 = tpu.concatenate %74, %75 in 0 : vector<2x32xf32>, vector<14x32xf32> -> vector<16x32xf32>
    %77 = vector.extract_strided_slice %9 {offsets = [17, 0], sizes = [3, 32], strides = [1, 1]} : vector<20x32xf32> to vector<3x32xf32>
    %78 = vector.extract_strided_slice %9 {offsets = [0, 0], sizes = [13, 32], strides = [1, 1]} : vector<20x32xf32> to vector<13x32xf32>
    %79 = tpu.concatenate %77, %78 in 0 : vector<3x32xf32>, vector<13x32xf32> -> vector<16x32xf32>
    %80 = vector.extract_strided_slice %9 {offsets = [16, 0], sizes = [4, 32], strides = [1, 1]} : vector<20x32xf32> to vector<4x32xf32>
    %81 = vector.extract_strided_slice %9 {offsets = [0, 0], sizes = [12, 32], strides = [1, 1]} : vector<20x32xf32> to vector<12x32xf32>
    %82 = tpu.concatenate %80, %81 in 0 : vector<4x32xf32>, vector<12x32xf32> -> vector<16x32xf32>
    %83 = tpu.concatenate %69, %70, %73, %76, %79, %82 in 1 : vector<16x32xf32>, vector<16x32xf32>, vector<16x32xf32>, vector<16x32xf32>, vector<16x32xf32>, vector<16x32xf32> -> vector<16x192xf32>
    %84 = arith.mulf %68, %83 : vector<16x192xf32>
    %85 = vector.extract_strided_slice %84 {offsets = [0, 0], sizes = [16, 32], strides = [1, 1]} : vector<16x192xf32> to vector<16x32xf32>
    %86 = vector.extract_strided_slice %84 {offsets = [0, 32], sizes = [16, 32], strides = [1, 1]} : vector<16x192xf32> to vector<16x32xf32>
    %87 = arith.addf %85, %86 : vector<16x32xf32>
    %88 = vector.extract_strided_slice %84 {offsets = [0, 64], sizes = [16, 32], strides = [1, 1]} : vector<16x192xf32> to vector<16x32xf32>
    %89 = arith.addf %87, %88 : vector<16x32xf32>
    %90 = vector.extract_strided_slice %84 {offsets = [0, 96], sizes = [16, 32], strides = [1, 1]} : vector<16x192xf32> to vector<16x32xf32>
    %91 = arith.addf %89, %90 : vector<16x32xf32>
    %92 = vector.extract_strided_slice %84 {offsets = [0, 128], sizes = [16, 32], strides = [1, 1]} : vector<16x192xf32> to vector<16x32xf32>
    %93 = arith.addf %91, %92 : vector<16x32xf32>
    %94 = vector.extract_strided_slice %84 {offsets = [0, 160], sizes = [16, 32], strides = [1, 1]} : vector<16x192xf32> to vector<16x32xf32>
    %95 = arith.addf %93, %94 : vector<16x32xf32>
    %96 = tpu.reciprocal %66 : vector<16x4xf32> -> vector<16x4xf32>
    %c0_15 = arith.constant 0 : index
    %c0_16 = arith.constant 0 : index
    %97 = vector.load %arg6[%c0_15, %c0_16] : memref<4x32xf32, #tpu.memory_space<vmem>>, vector<4x32xf32>
    %cst_17 = arith.constant dense<0.000000e+00> : vector<16x32xf32>
    %98 = tpu.matmul %96, %97, %cst_17 {dimension_numbers = #tpu.dot_dimension_numbers<[1], [0], [0], [1], [0, 0, 1, 1], [], []>} : vector<16x4xf32>, vector<4x32xf32>, vector<16x32xf32> -> vector<16x32xf32>
    %99 = arith.mulf %95, %98 : vector<16x32xf32>
    %c0_18 = arith.constant 0 : index
    %c0_19 = arith.constant 0 : index
    %c0_20 = arith.constant 0 : index
    %100 = vector.load %arg2[%c0_18, %c0_19, %c0_20] : memref<1x16x32xf32, #tpu.memory_space<vmem>>, vector<1x16x32xf32>
    %101 = vector.shape_cast %100 : vector<1x16x32xf32> to vector<16x32xf32>
    %102 = arith.addf %101, %99 : vector<16x32xf32>
    %c0_21 = arith.constant 0 : index
    %c0_22 = arith.constant 0 : index
    %c0_23 = arith.constant 0 : index
    %103 = vector.load %arg7[%c0_21, %c0_22, %c0_23] : memref<1x16x32xf32, #tpu.memory_space<vmem>>, vector<1x16x32xf32>
    %104 = vector.shape_cast %103 : vector<1x16x32xf32> to vector<16x32xf32>
    %105 = vector.shape_cast %102 : vector<16x32xf32> to vector<1x16x32xf32>
    tpu.vector_store %arg7[%c0_21, %c0_22, %c0_23], %105 {strides = array<i32>} : memref<1x16x32xf32, #tpu.memory_space<vmem>>, vector<1x16x32xf32>,
    %c0_24 = arith.constant 0 : index
    %c0_25 = arith.constant 0 : index
    %c0_26 = arith.constant 0 : index
    %106 = vector.load %arg8[%c0_24, %c0_25, %c0_26] : memref<1x16x32xf32, #tpu.memory_space<vmem>>, vector<1x16x32xf32>
    %107 = vector.shape_cast %106 : vector<1x16x32xf32> to vector<16x32xf32>
    %108 = vector.shape_cast %99 : vector<16x32xf32> to vector<1x16x32xf32>
    tpu.vector_store %arg8[%c0_24, %c0_25, %c0_26], %108 {strides = array<i32>} : memref<1x16x32xf32, #tpu.memory_space<vmem>>, vector<1x16x32xf32>,
    return
  }
  func.func @transform_0(%arg0: i32) -> (i32, i32, i32) {
    %c0_i32 = arith.constant 0 : i32
    %c0_i32_0 = arith.constant 0 : i32
    %c0_i32_1 = arith.constant 0 : i32
    return %arg0, %c0_i32, %c0_i32_0 : i32, i32, i32
  }
  func.func @transform_1(%arg0: i32) -> (i32, i32, i32) {
    %c0_i32 = arith.constant 0 : i32
    %c0_i32_0 = arith.constant 0 : i32
    %c0_i32_1 = arith.constant 0 : i32
    return %arg0, %c0_i32, %c0_i32_0 : i32, i32, i32
  }
  func.func @transform_2(%arg0: i32) -> (i32, i32) {
    %c0_i32 = arith.constant 0 : i32
    %c0_i32_0 = arith.constant 0 : i32
    %c0_i32_1 = arith.constant 0 : i32
    return %c0_i32, %c0_i32_0 : i32, i32
  }
  func.func @transform_3(%arg0: i32) -> (i32, i32) {
    %c0_i32 = arith.constant 0 : i32
    %c0_i32_0 = arith.constant 0 : i32
    %c0_i32_1 = arith.constant 0 : i32
    return %c0_i32, %c0_i32_0 : i32, i32
  }
  func.func @transform_4(%arg0: i32) -> (i32, i32) {
    %c0_i32 = arith.constant 0 : i32
    %c0_i32_0 = arith.constant 0 : i32
    %c0_i32_1 = arith.constant 0 : i32
    return %c0_i32, %c0_i32_0 : i32, i32
  }
  func.func @transform_5(%arg0: i32) -> (i32, i32) {
    %c0_i32 = arith.constant 0 : i32
    %c0_i32_0 = arith.constant 0 : i32
    %c0_i32_1 = arith.constant 0 : i32
    return %c0_i32, %c0_i32_0 : i32, i32
  }
  func.func @transform_6(%arg0: i32) -> (i32, i32, i32) {
    %c0_i32 = arith.constant 0 : i32
    %c0_i32_0 = arith.constant 0 : i32
    %c0_i32_1 = arith.constant 0 : i32
    return %arg0, %c0_i32, %c0_i32_0 : i32, i32, i32
  }
  func.func @transform_7(%arg0: i32) -> (i32, i32, i32) {
    %c0_i32 = arith.constant 0 : i32
    %c0_i32_0 = arith.constant 0 : i32
    %c0_i32_1 = arith.constant 0 : i32
    return %arg0, %c0_i32, %c0_i32_0 : i32, i32, i32
  }
}

</mosaic_0001>

<llo_original>
// kernel: dilated_transformer_layer.5
$region0: #{dilated_transformer_layer.5}
  #allocation0 [shape = 'u32[]', space=smem, size = 0x4, offset = 0x4, fixed_abs, tag = 'smem constant byte address 0x4 - core index']
  #allocation1 [shape = 'u32[144,128]{1,0:T(1,128)}', space=vmem, size = 0x12000, scoped, tag = 'internal scratch']
  %s0 = inlined_call_operand.vmem [shape: f32[32,32], index: 0, kind: input, shape index: {}]
  %s1 = inlined_call_operand.vmem [shape: f32[1,32], index: 1, kind: input, shape index: {}]
  %s2 = inlined_call_operand.vmem [shape: f32[1,32], index: 2, kind: input, shape index: {}]
  %s3 = inlined_call_operand.vmem [shape: f32[32,64], index: 3, kind: input, shape index: {}]
  %s4 = inlined_call_operand.vmem [shape: f32[1,64], index: 4, kind: input, shape index: {}]
  %s5 = inlined_call_operand.vmem [shape: f32[64,32], index: 5, kind: input, shape index: {}]
  %s6 = inlined_call_operand.vmem [shape: f32[1,32], index: 6, kind: input, shape index: {}]
  %s7 = inlined_call_operand.hbm [shape: f32[32,32], index: 7, kind: output, shape index: {}]
  %s8 = sld [smem:[#allocation0]]
  $region38: #{dilated_transformer_layer.5} parent=0
    _
  %s10 = ssub.s32 1, %s8
  %s11 = scalar_select 0, %s10, %s8
  $region1: #{dilated_transformer_layer.5} parent=0
    #allocation2 [shape = 'u8[16384]{0}', space=vmem, size = 0x4000, scoped, tag = 'output window, operand 0, single buffered']
    #allocation3 [shape = 's32[1]{0}', space=sflag, size = 0x4, scoped, tag = 'scoped memory for dilated_transformer_layer.5']
    %12 = vsyncpa [#allocation3], 0
    // Predicated region
    $region2: #{dilated_transformer_layer.5} parent=1 // pred_check
      _
    $region3: #{dilated_transformer_layer.5} parent=1 // pred_check_branch
      %14 = sbr.rel (0) target = $region5
    $region4: #{dilated_transformer_layer.5} parent=1 // pred_region
      _
    $region5: #{dilated_transformer_layer.5} parent=1 // pred_fallthru
      _
    // Predicated region
    $region6: #{dilated_transformer_layer.5} parent=1 // pred_check
      _
    $region7: #{dilated_transformer_layer.5} parent=1 // pred_check_branch
      %16 = sbr.rel (0) target = $region9
    $region8: #{dilated_transformer_layer.5} parent=1 // pred_region
      _
    $region9: #{dilated_transformer_layer.5} parent=1 // pred_fallthru
      _
    // Predicated region
    $region10: #{dilated_transformer_layer.5} parent=1 // pred_check
      _
    $region11: #{dilated_transformer_layer.5} parent=1 // pred_check_branch
      %18 = sbr.rel (0) target = $region13
    $region12: #{dilated_transformer_layer.5} parent=1 // pred_region
      _
    $region13: #{dilated_transformer_layer.5} parent=1 // pred_fallthru
      _
    // Predicated region
    $region14: #{dilated_transformer_layer.5} parent=1 // pred_check
      _
    $region15: #{dilated_transformer_layer.5} parent=1 // pred_check_branch
      %20 = sbr.rel (0) target = $region17
    $region16: #{dilated_transformer_layer.5} parent=1 // pred_region
      _
    $region17: #{dilated_transformer_layer.5} parent=1 // pred_fallthru
      _
    // Predicated region
    $region18: #{dilated_transformer_layer.5} parent=1 // pred_check
      _
    $region19: #{dilated_transformer_layer.5} parent=1 // pred_check_branch
      %22 = sbr.rel (0) target = $region21
    $region20: #{dilated_transformer_layer.5} parent=1 // pred_region
      _
    $region21: #{dilated_transformer_layer.5} parent=1 // pred_fallthru
      _
    // Predicated region
    $region22: #{dilated_transformer_layer.5} parent=1 // pred_check
      _
    $region23: #{dilated_transformer_layer.5} parent=1 // pred_check_branch
      %24 = sbr.rel (0) target = $region25
    $region24: #{dilated_transformer_layer.5} parent=1 // pred_region
      _
    $region25: #{dilated_transformer_layer.5} parent=1 // pred_fallthru
      _
    // Predicated region
    $region26: #{dilated_transformer_layer.5} parent=1 // pred_check
      _
    $region27: #{dilated_transformer_layer.5} parent=1 // pred_check_branch
      %26 = sbr.rel (0) target = $region29
    $region28: #{dilated_transformer_layer.5} parent=1 // pred_region
      _
    $region29: #{dilated_transformer_layer.5} parent=1 // pred_fallthru
      _
    %v27 = vld [vmem:[%s0] sm:$0xff]
    %v28 = vld [vmem:[%s0 + $0x8] sm:$0xff]
    %v29 = vld [vmem:[%s0 + $0x10] sm:$0xff]
    %v30 = vld [vmem:[%s0 + $0x18] sm:$0xff]
    %vm31 = vcmask 261120
    %v32 = vsel %vm31, %v27, 0.0
    %33 = vadd.xlane.f32.xlu0 %v32
    %v34 = vpop.xlane.xlu0 %33
    %v35 = vsel %vm31, %v28, 0.0
    %36 = vadd.xlane.f32.xlu0 %v35
    %v37 = vpop.xlane.xlu0 %36
    %v38 = vsel %vm31, %v29, 0.0
    %39 = vadd.xlane.f32.xlu0 %v38
    %v40 = vpop.xlane.xlu0 %39
    %v41 = vsel %vm31, %v30, 0.0
    %42 = vadd.xlane.f32.xlu0 %v41
    %v43 = vpop.xlane.xlu0 %42
    %v44 = vrcp.pop 32.0
    %v45 = vmul.f32 %v34, %v44
    %v46 = vmul.f32 %v37, %v44
    %v47 = vmul.f32 %v40, %v44
    %v48 = vmul.f32 %v43, %v44
    %v49 = vsub.f32 %v27, %v45
    %v50 = vsub.f32 %v28, %v46
    %v51 = vsub.f32 %v29, %v47
    %v52 = vsub.f32 %v30, %v48
    %v53 = vmul.f32 %v49, %v49
    %v54 = vmul.f32 %v50, %v50
    %v55 = vmul.f32 %v51, %v51
    %v56 = vmul.f32 %v52, %v52
    %v57 = vsel %vm31, %v53, 0.0
    %58 = vadd.xlane.f32.xlu0 %v57
    %v59 = vpop.xlane.xlu0 %58
    %v60 = vsel %vm31, %v54, 0.0
    %61 = vadd.xlane.f32.xlu0 %v60
    %v62 = vpop.xlane.xlu0 %61
    %v63 = vsel %vm31, %v55, 0.0
    %64 = vadd.xlane.f32.xlu0 %v63
    %v65 = vpop.xlane.xlu0 %64
    %v66 = vsel %vm31, %v56, 0.0
    %67 = vadd.xlane.f32.xlu0 %v66
    %v68 = vpop.xlane.xlu0 %67
    %v69 = vmul.f32 %v59, %v44
    %v70 = vmul.f32 %v62, %v44
    %v71 = vmul.f32 %v65, %v44
    %v72 = vmul.f32 %v68, %v44
    %v73 = vadd.f32 %v69, 1e-05
    %v74 = vadd.f32 %v70, 1e-05
    %v75 = vadd.f32 %v71, 1e-05
    %v76 = vadd.f32 %v72, 1e-05
    %v77 = vrsqrt.pop %v73
    %v78 = vrsqrt.pop %v74
    %v79 = vrsqrt.pop %v75
    %v80 = vrsqrt.pop %v76
    %v81 = vmul.f32 %v49, %v77
    %v82 = vmul.f32 %v50, %v78
    %v83 = vmul.f32 %v51, %v79
    %v84 = vmul.f32 %v52, %v80
    %v85 = vld [vmem:[%s1] sm:$0x1]
    %v87 = vlaneseq
    %v88 = vshrl.u32 %v87, 7
    %v89 = vsub.s32 0, %v88
    %v90 = vrot.slane %v85, %v89
    %v92 = vmul.f32 %v81, %v90
    %v93 = vmul.f32 %v82, %v90
    %v94 = vmul.f32 %v83, %v90
    %v95 = vmul.f32 %v84, %v90
    %v96 = vld [vmem:[%s2] sm:$0x1]
    %v98 = vlaneseq
    %v99 = vshrl.u32 %v98, 7
    %v100 = vsub.s32 0, %v99
    %v101 = vrot.slane %v96, %v100
    %v103 = vadd.f32 %v92, %v101
    %v104 = vadd.f32 %v93, %v101
    %v105 = vadd.f32 %v94, %v101
    %v106 = vadd.f32 %v95, %v101
    %v107 = vld [vmem:[%s3] sm:$0xff]
    %v108 = vld [vmem:[%s3 + $0x8] sm:$0xff]
    %v109 = vld [vmem:[%s3 + $0x10] sm:$0xff]
    %v110 = vld [vmem:[%s3 + $0x18] sm:$0xff]
    %v111 = vld [vmem:[%s4] sm:$0x1]
    %v113 = vlaneseq
    %v114 = vshrl.u32 %v113, 7
    %v115 = vsub.s32 0, %v114
    %v116 = vrot.slane %v111, %v115
    %v119 = vsel %vm31, %v103, 0
    %v122 = vsel %vm31, %v104, 0
    %v125 = vsel %vm31, %v105, 0
    %v128 = vsel %vm31, %v106, 0
    %130 = vmatprep.subr.mxu0 0.0
    %131 = vmatpush1.msra.mxu0 %v107
    %132 = vmatprep.subr.mxu0 0.0
    %133 = vmatpush1.msra.mxu0 %v108
    %134 = vmatprep.subr.mxu0 0.0
    %135 = vmatpush1.msra.mxu0 %v109
    %136 = vmatprep.subr.mxu0 0.0
    %137 = vmatpush1.msra.mxu0 %v110
    %138 = vmatprep.subr.mxu0 0.0
    %139 = vmatpush1.msra.mxu0 0.0
    %140 = vmatprep.subr.mxu0 0.0
    %141 = vmatpush1.msra.mxu0 0.0
    %142 = vmatprep.subr.mxu0 0.0
    %143 = vmatpush1.msra.mxu0 0.0
    %144 = vmatprep.subr.mxu0 0.0
    %145 = vmatpush1.msra.mxu0 0.0
    %146 = vmatprep.subr.mxu0 0.0
    %147 = vmatpush1.msra.mxu0 0.0
    %148 = vmatprep.subr.mxu0 0.0
    %149 = vmatpush1.msra.mxu0 0.0
    %150 = vmatprep.subr.mxu0 0.0
    %151 = vmatpush1.msra.mxu0 0.0
    %152 = vmatprep.subr.mxu0 0.0
    %153 = vmatpush1.msra.mxu0 0.0
    %154 = vmatprep.subr.mxu0 0.0
    %155 = vmatpush1.msra.mxu0 0.0
    %156 = vmatprep.subr.mxu0 0.0
    %157 = vmatpush1.msra.mxu0 0.0
    %158 = vmatprep.subr.mxu0 0.0
    %159 = vmatpush1.msra.mxu0 0.0
    %160 = vmatprep.subr.mxu0 0.0
    %161 = vmatpush1.msra.mxu0 0.0
    %162 = vmatprep.subr.mxu0 0.0
    %163 = vmatpush1.msra.mxu0 0.0
    %164 = vmatprep.subr.mxu0 0.0
    %165 = vmatpush1.msra.mxu0 0.0
    %166 = vmatprep.subr.mxu0 0.0
    %167 = vmatpush1.msra.mxu0 0.0
    %168 = vmatprep.subr.mxu0 0.0
    %169 = vmatpush1.msra.mxu0 0.0
    %170 = vmatprep.subr.mxu0 0.0
    %171 = vmatpush1.msra.mxu0 0.0
    %172 = vmatprep.subr.mxu0 0.0
    %173 = vmatpush1.msra.mxu0 0.0
    %174 = vmatprep.subr.mxu0 0.0
    %175 = vmatpush1.msra.mxu0 0.0
    %176 = vmatprep.subr.mxu0 0.0
    %177 = vmatpush1.msra.mxu0 0.0
    %178 = vmatprep.subr.mxu0 0.0
    %179 = vmatpush1.msra.mxu0 0.0
    %180 = vmatprep.subr.mxu0 0.0
    %181 = vmatpush1.msra.mxu0 0.0
    %182 = vmatprep.subr.mxu0 0.0
    %183 = vmatpush1.msra.mxu0 0.0
    %184 = vmatprep.subr.mxu0 0.0
    %185 = vmatpush1.msra.mxu0 0.0
    %186 = vmatprep.subr.mxu0 0.0
    %187 = vmatpush1.msra.mxu0 0.0
    %188 = vmatprep.subr.mxu0 0.0
    %189 = vmatpush1.msra.mxu0 0.0
    %190 = vmatprep.subr.mxu0 0.0
    %191 = vmatpush1.msra.mxu0 0.0
    %192 = vmatprep.subr.mxu0 0.0
    %193 = vmatpush1.msra.mxu0 0.0
    %194 = vmatprep.mubr.f32.mxu0 0.0
    %195 = vmatmul.mubr.f32.gmra.mrb[0].mxu0 %v119
    %v196 = vpop.f32.mrb[0].mxu0
    %v197 = vadd.f32 %v116, %v196
    %v198 = vpop.f32.mrb[0].mxu0
    %199 = vmatprep.mubr.f32.mxu0 0.0
    %200 = vmatmul.mubr.f32.gmra.mrb[0].mxu0 %v122
    %v201 = vpop.f32.mrb[0].mxu0
    %v202 = vadd.f32 %v116, %v201
    %v203 = vpop.f32.mrb[0].mxu0
    %204 = vmatprep.mubr.f32.mxu0 0.0
    %205 = vmatmul.mubr.f32.gmra.mrb[0].mxu0 %v125
    %v206 = vpop.f32.mrb[0].mxu0
    %v207 = vadd.f32 %v116, %v206
    %v208 = vpop.f32.mrb[0].mxu0
    %209 = vmatprep.mubr.f32.mxu0 0.0
    %210 = vmatmul.mubr.f32.gmra.mrb[0].mxu0 %v128
    %v211 = vpop.f32.mrb[0].mxu0
    %v212 = vadd.f32 %v116, %v211
    %v213 = vpop.f32.mrb[0].mxu0
    %214 = vdwg.mxu0
    %v215 = vmul.f32 %v197, 0.5
    %v216 = vmul.f32 %v202, 0.5
    %v217 = vmul.f32 %v207, 0.5
    %v218 = vmul.f32 %v212, 0.5
    %v219 = vmul.f32 %v197, 0.70710677
    %v220 = vmul.f32 %v202, 0.70710677
    %v221 = vmul.f32 %v207, 0.70710677
    %v222 = vmul.f32 %v212, 0.70710677
    %v223 = verf.f32.pop %v219
    %v224 = verf.f32.pop %v220
    %v225 = verf.f32.pop %v221
    %v226 = verf.f32.pop %v222
    %v227 = vadd.f32 %v223, 1.0
    %v228 = vadd.f32 %v224, 1.0
    %v229 = vadd.f32 %v225, 1.0
    %v230 = vadd.f32 %v226, 1.0
    %v231 = vmul.f32 %v215, %v227
    %v232 = vmul.f32 %v216, %v228
    %v233 = vmul.f32 %v217, %v229
    %v234 = vmul.f32 %v218, %v230
    %v235 = vld [vmem:[%s5] sm:$0xff]
    %v236 = vld [vmem:[%s5 + $0x8] sm:$0xff]
    %v237 = vld [vmem:[%s5 + $0x10] sm:$0xff]
    %v238 = vld [vmem:[%s5 + $0x18] sm:$0xff]
    %v239 = vld [vmem:[%s5 + $0x20] sm:$0xff]
    %v240 = vld [vmem:[%s5 + $0x28] sm:$0xff]
    %v241 = vld [vmem:[%s5 + $0x30] sm:$0xff]
    %v242 = vld [vmem:[%s5 + $0x38] sm:$0xff]
    %v243 = vld [vmem:[%s6] sm:$0x1]
    %v245 = vlaneseq
    %v246 = vshrl.u32 %v245, 7
    %v247 = vsub.s32 0, %v246
    %v248 = vrot.slane %v243, %v247
    %vm250 = vcmask 523264
    %v252 = vsel %vm250, %v231, 0
    %v255 = vsel %vm250, %v232, 0
    %v258 = vsel %vm250, %v233, 0
    %v261 = vsel %vm250, %v234, 0
    %263 = vmatprep.subr.mxu0 0.0
    %264 = vmatpush1.msra.mxu0 %v235
    %265 = vmatprep.subr.mxu0 0.0
    %266 = vmatpush1.msra.mxu0 %v236
    %267 = vmatprep.subr.mxu0 0.0
    %268 = vmatpush1.msra.mxu0 %v237
    %269 = vmatprep.subr.mxu0 0.0
    %270 = vmatpush1.msra.mxu0 %v238
    %271 = vmatprep.subr.mxu0 0.0
    %272 = vmatpush1.msra.mxu0 %v239
    %273 = vmatprep.subr.mxu0 0.0
    %274 = vmatpush1.msra.mxu0 %v240
    %275 = vmatprep.subr.mxu0 0.0
    %276 = vmatpush1.msra.mxu0 %v241
    %277 = vmatprep.subr.mxu0 0.0
    %278 = vmatpush1.msra.mxu0 %v242
    %279 = vmatprep.subr.mxu0 0.0
    %280 = vmatpush1.msra.mxu0 0.0
    %281 = vmatprep.subr.mxu0 0.0
    %282 = vmatpush1.msra.mxu0 0.0
    %283 = vmatprep.subr.mxu0 0.0
    %284 = vmatpush1.msra.mxu0 0.0
    %285 = vmatprep.subr.mxu0 0.0
    %286 = vmatpush1.msra.mxu0 0.0
    %287 = vmatprep.subr.mxu0 0.0
    %288 = vmatpush1.msra.mxu0 0.0
    %289 = vmatprep.subr.mxu0 0.0
    %290 = vmatpush1.msra.mxu0 0.0
    %291 = vmatprep.subr.mxu0 0.0
    %292 = vmatpush1.msra.mxu0 0.0
    %293 = vmatprep.subr.mxu0 0.0
    %294 = vmatpush1.msra.mxu0 0.0
    %295 = vmatprep.subr.mxu0 0.0
    %296 = vmatpush1.msra.mxu0 0.0
    %297 = vmatprep.subr.mxu0 0.0
    %298 = vmatpush1.msra.mxu0 0.0
    %299 = vmatprep.subr.mxu0 0.0
    %300 = vmatpush1.msra.mxu0 0.0
    %301 = vmatprep.subr.mxu0 0.0
    %302 = vmatpush1.msra.mxu0 0.0
    %303 = vmatprep.subr.mxu0 0.0
    %304 = vmatpush1.msra.mxu0 0.0
    %305 = vmatprep.subr.mxu0 0.0
    %306 = vmatpush1.msra.mxu0 0.0
    %307 = vmatprep.subr.mxu0 0.0
    %308 = vmatpush1.msra.mxu0 0.0
    %309 = vmatprep.subr.mxu0 0.0
    %310 = vmatpush1.msra.mxu0 0.0
    %311 = vmatprep.subr.mxu0 0.0
    %312 = vmatpush1.msra.mxu0 0.0
    %313 = vmatprep.subr.mxu0 0.0
    %314 = vmatpush1.msra.mxu0 0.0
    %315 = vmatprep.subr.mxu0 0.0
    %316 = vmatpush1.msra.mxu0 0.0
    %317 = vmatprep.subr.mxu0 0.0
    %318 = vmatpush1.msra.mxu0 0.0
    %319 = vmatprep.subr.mxu0 0.0
    %320 = vmatpush1.msra.mxu0 0.0
    %321 = vmatprep.subr.mxu0 0.0
    %322 = vmatpush1.msra.mxu0 0.0
    %323 = vmatprep.subr.mxu0 0.0
    %324 = vmatpush1.msra.mxu0 0.0
    %325 = vmatprep.subr.mxu0 0.0
    %326 = vmatpush1.msra.mxu0 0.0
    %327 = vmatprep.mubr.f32.mxu0 0.0
    %328 = vmatmul.mubr.f32.gmra.mrb[0].mxu0 %v252
    %v329 = vpop.f32.mrb[0].mxu0
    %v330 = vadd.f32 %v248, %v329
    %v331 = vpop.f32.mrb[0].mxu0
    %332 = vmatprep.mubr.f32.mxu0 0.0
    %333 = vmatmul.mubr.f32.gmra.mrb[0].mxu0 %v255
    %v334 = vpop.f32.mrb[0].mxu0
    %v335 = vadd.f32 %v248, %v334
    %v336 = vpop.f32.mrb[0].mxu0
    %337 = vmatprep.mubr.f32.mxu0 0.0
    %338 = vmatmul.mubr.f32.gmra.mrb[0].mxu0 %v258
    %v339 = vpop.f32.mrb[0].mxu0
    %v340 = vadd.f32 %v248, %v339
    %v341 = vpop.f32.mrb[0].mxu0
    %342 = vmatprep.mubr.f32.mxu0 0.0
    %343 = vmatmul.mubr.f32.gmra.mrb[0].mxu0 %v261
    %v344 = vpop.f32.mrb[0].mxu0
    %v345 = vadd.f32 %v248, %v344
    %v346 = vpop.f32.mrb[0].mxu0
    %347 = vdwg.mxu0
    %v348 = vadd.f32 %v27, %v330
    %v349 = vadd.f32 %v28, %v335
    %v350 = vadd.f32 %v29, %v340
    %v351 = vadd.f32 %v30, %v345
    %352 = vst.msk [vmem:[#allocation2] sm:$0xff] %vm31, %v348
    %353 = vst.msk [vmem:[#allocation2 + $0x8] sm:$0xff] %vm31, %v349
    %354 = vst.msk [vmem:[#allocation2 + $0x10] sm:$0xff] %vm31, %v350
    %355 = vst.msk [vmem:[#allocation2 + $0x18] sm:$0xff] %vm31, %v351
    // Predicated region
    $region30: #{dilated_transformer_layer.5} parent=1 // pred_check
      _
    $region31: #{dilated_transformer_layer.5} parent=1 // pred_check_branch
      %357 = sbr.rel (0) target = $region33
    $region32: #{dilated_transformer_layer.5} parent=1 // pred_region
      %s359 = ssub.s32 512, 512
      %360 = vsyncadd [#allocation3], %s359
      %s361 = sshll.u32 [#allocation2], 4
      %s362 = int_to_ptr.vmem [resolvable:$true] %s361
      %367 = dma.vmem_to_hbm [thread:$0]  %s362, 512, %s7, [#allocation3], 128, 128, 8
    $region33: #{dilated_transformer_layer.5} parent=1 // pred_fallthru
      _
    // Predicated region
    $region34: #{dilated_transformer_layer.5} parent=1 // pred_check
      _
    $region35: #{dilated_transformer_layer.5} parent=1 // pred_check_branch
      %369 = sbr.rel (0) target = $region37
    $region36: #{dilated_transformer_layer.5} parent=1 // pred_region
      %370 = dma.done [#allocation3], 512
    $region37: #{dilated_transformer_layer.5} parent=1 // pred_fallthru
      _
    %371 = vsyncpa [#allocation3], 1

// kernel: dilated_transformer_layer.3
$region0: #{dilated_transformer_layer.3}
  #allocation0 [shape = 'u32[]', space=smem, size = 0x4, offset = 0x4, fixed_abs, tag = 'smem constant byte address 0x4 - core index']
  #allocation1 [shape = 'u32[144,128]{1,0:T(1,128)}', space=vmem, size = 0x12000, scoped, tag = 'internal scratch']
  %s0 = inlined_call_operand.vmem [shape: f32[32,32], index: 0, kind: input, shape index: {}]
  %s1 = inlined_call_operand.vmem [shape: f32[1,32], index: 1, kind: input, shape index: {}]
  %s2 = inlined_call_operand.vmem [shape: f32[1,32], index: 2, kind: input, shape index: {}]
  %s3 = inlined_call_operand.vmem [shape: f32[32,96], index: 3, kind: input, shape index: {}]
  %s4 = inlined_call_operand.vmem [shape: f32[1,96], index: 4, kind: input, shape index: {}]
  %s5 = inlined_call_operand.vmem [shape: f32[32,96], index: 5, kind: output, shape index: {}]
  %s6 = sld [smem:[#allocation0]]
  $region30: #{dilated_transformer_layer.3} parent=0
    _
  %s8 = ssub.s32 1, %s6
  %s9 = scalar_select 0, %s8, %s6
  // Predicated region
  $region2: #{dilated_transformer_layer.3} parent=0 // pred_check
    _
  $region3: #{dilated_transformer_layer.3} parent=0 // pred_check_branch
    %11 = sbr.rel (0) target = $region5
  $region4: #{dilated_transformer_layer.3} parent=0 // pred_region
    _
  $region5: #{dilated_transformer_layer.3} parent=0 // pred_fallthru
    _
  // Predicated region
  $region6: #{dilated_transformer_layer.3} parent=0 // pred_check
    _
  $region7: #{dilated_transformer_layer.3} parent=0 // pred_check_branch
    %13 = sbr.rel (0) target = $region9
  $region8: #{dilated_transformer_layer.3} parent=0 // pred_region
    _
  $region9: #{dilated_transformer_layer.3} parent=0 // pred_fallthru
    _
  // Predicated region
  $region10: #{dilated_transformer_layer.3} parent=0 // pred_check
    _
  $region11: #{dilated_transformer_layer.3} parent=0 // pred_check_branch
    %15 = sbr.rel (0) target = $region13
  $region12: #{dilated_transformer_layer.3} parent=0 // pred_region
    _
  $region13: #{dilated_transformer_layer.3} parent=0 // pred_fallthru
    _
  // Predicated region
  $region14: #{dilated_transformer_layer.3} parent=0 // pred_check
    _
  $region15: #{dilated_transformer_layer.3} parent=0 // pred_check_branch
    %17 = sbr.rel (0) target = $region17
  $region16: #{dilated_transformer_layer.3} parent=0 // pred_region
    _
  $region17: #{dilated_transformer_layer.3} parent=0 // pred_fallthru
    _
  // Predicated region
  $region18: #{dilated_transformer_layer.3} parent=0 // pred_check
    _
  $region19: #{dilated_transformer_layer.3} parent=0 // pred_check_branch
    %19 = sbr.rel (0) target = $region21
  $region20: #{dilated_transformer_layer.3} parent=0 // pred_region
    _
  $region21: #{dilated_transformer_layer.3} parent=0 // pred_fallthru
    _
  %v20 = vld [vmem:[%s0] sm:$0xff]
  %v21 = vld [vmem:[%s0 + $0x8] sm:$0xff]
  %v22 = vld [vmem:[%s0 + $0x10] sm:$0xff]
  %v23 = vld [vmem:[%s0 + $0x18] sm:$0xff]
  %vm24 = vcmask 261120
  %v25 = vsel %vm24, %v20, 0.0
  %26 = vadd.xlane.f32.xlu0 %v25
  %v27 = vpop.xlane.xlu0 %26
  %v28 = vsel %vm24, %v21, 0.0
  %29 = vadd.xlane.f32.xlu0 %v28
  %v30 = vpop.xlane.xlu0 %29
  %v31 = vsel %vm24, %v22, 0.0
  %32 = vadd.xlane.f32.xlu0 %v31
  %v33 = vpop.xlane.xlu0 %32
  %v34 = vsel %vm24, %v23, 0.0
  %35 = vadd.xlane.f32.xlu0 %v34
  %v36 = vpop.xlane.xlu0 %35
  %v37 = vrcp.pop 32.0
  %v38 = vmul.f32 %v27, %v37
  %v39 = vmul.f32 %v30, %v37
  %v40 = vmul.f32 %v33, %v37
  %v41 = vmul.f32 %v36, %v37
  %v42 = vsub.f32 %v20, %v38
  %v43 = vsub.f32 %v21, %v39
  %v44 = vsub.f32 %v22, %v40
  %v45 = vsub.f32 %v23, %v41
  %v46 = vmul.f32 %v42, %v42
  %v47 = vmul.f32 %v43, %v43
  %v48 = vmul.f32 %v44, %v44
  %v49 = vmul.f32 %v45, %v45
  %v50 = vsel %vm24, %v46, 0.0
  %51 = vadd.xlane.f32.xlu0 %v50
  %v52 = vpop.xlane.xlu0 %51
  %v53 = vsel %vm24, %v47, 0.0
  %54 = vadd.xlane.f32.xlu0 %v53
  %v55 = vpop.xlane.xlu0 %54
  %v56 = vsel %vm24, %v48, 0.0
  %57 = vadd.xlane.f32.xlu0 %v56
  %v58 = vpop.xlane.xlu0 %57
  %v59 = vsel %vm24, %v49, 0.0
  %60 = vadd.xlane.f32.xlu0 %v59
  %v61 = vpop.xlane.xlu0 %60
  %v62 = vmul.f32 %v52, %v37
  %v63 = vmul.f32 %v55, %v37
  %v64 = vmul.f32 %v58, %v37
  %v65 = vmul.f32 %v61, %v37
  %v66 = vadd.f32 %v62, 1e-05
  %v67 = vadd.f32 %v63, 1e-05
  %v68 = vadd.f32 %v64, 1e-05
  %v69 = vadd.f32 %v65, 1e-05
  %v70 = vrsqrt.pop %v66
  %v71 = vrsqrt.pop %v67
  %v72 = vrsqrt.pop %v68
  %v73 = vrsqrt.pop %v69
  %v74 = vmul.f32 %v42, %v70
  %v75 = vmul.f32 %v43, %v71
  %v76 = vmul.f32 %v44, %v72
  %v77 = vmul.f32 %v45, %v73
  %v78 = vld [vmem:[%s1] sm:$0x1]
  %v80 = vlaneseq
  %v81 = vshrl.u32 %v80, 7
  %v82 = vsub.s32 0, %v81
  %v83 = vrot.slane %v78, %v82
  %v85 = vmul.f32 %v74, %v83
  %v86 = vmul.f32 %v75, %v83
  %v87 = vmul.f32 %v76, %v83
  %v88 = vmul.f32 %v77, %v83
  %v89 = vld [vmem:[%s2] sm:$0x1]
  %v91 = vlaneseq
  %v92 = vshrl.u32 %v91, 7
  %v93 = vsub.s32 0, %v92
  %v94 = vrot.slane %v89, %v93
  %v96 = vadd.f32 %v85, %v94
  %v97 = vadd.f32 %v86, %v94
  %v98 = vadd.f32 %v87, %v94
  %v99 = vadd.f32 %v88, %v94
  %v100 = vld [vmem:[%s3] sm:$0xff]
  %v101 = vld [vmem:[%s3 + $0x8] sm:$0xff]
  %v102 = vld [vmem:[%s3 + $0x10] sm:$0xff]
  %v103 = vld [vmem:[%s3 + $0x18] sm:$0xff]
  %v104 = vld [vmem:[%s4] sm:$0x1]
  %v106 = vlaneseq
  %v107 = vshrl.u32 %v106, 7
  %v108 = vsub.s32 0, %v107
  %v109 = vrot.slane %v104, %v108
  %v112 = vsel %vm24, %v96, 0
  %v115 = vsel %vm24, %v97, 0
  %v118 = vsel %vm24, %v98, 0
  %v121 = vsel %vm24, %v99, 0
  %123 = vmatprep.subr.mxu0 0.0
  %124 = vmatpush1.msra.mxu0 %v100
  %125 = vmatprep.subr.mxu0 0.0
  %126 = vmatpush1.msra.mxu0 %v101
  %127 = vmatprep.subr.mxu0 0.0
  %128 = vmatpush1.msra.mxu0 %v102
  %129 = vmatprep.subr.mxu0 0.0
  %130 = vmatpush1.msra.mxu0 %v103
  %131 = vmatprep.subr.mxu0 0.0
  %132 = vmatpush1.msra.mxu0 0.0
  %133 = vmatprep.subr.mxu0 0.0
  %134 = vmatpush1.msra.mxu0 0.0
  %135 = vmatprep.subr.mxu0 0.0
  %136 = vmatpush1.msra.mxu0 0.0
  %137 = vmatprep.subr.mxu0 0.0
  %138 = vmatpush1.msra.mxu0 0.0
  %139 = vmatprep.subr.mxu0 0.0
  %140 = vmatpush1.msra.mxu0 0.0
  %141 = vmatprep.subr.mxu0 0.0
  %142 = vmatpush1.msra.mxu0 0.0
  %143 = vmatprep.subr.mxu0 0.0
  %144 = vmatpush1.msra.mxu0 0.0
  %145 = vmatprep.subr.mxu0 0.0
  %146 = vmatpush1.msra.mxu0 0.0
  %147 = vmatprep.subr.mxu0 0.0
  %148 = vmatpush1.msra.mxu0 0.0
  %149 = vmatprep.subr.mxu0 0.0
  %150 = vmatpush1.msra.mxu0 0.0
  %151 = vmatprep.subr.mxu0 0.0
  %152 = vmatpush1.msra.mxu0 0.0
  %153 = vmatprep.subr.mxu0 0.0
  %154 = vmatpush1.msra.mxu0 0.0
  %155 = vmatprep.subr.mxu0 0.0
  %156 = vmatpush1.msra.mxu0 0.0
  %157 = vmatprep.subr.mxu0 0.0
  %158 = vmatpush1.msra.mxu0 0.0
  %159 = vmatprep.subr.mxu0 0.0
  %160 = vmatpush1.msra.mxu0 0.0
  %161 = vmatprep.subr.mxu0 0.0
  %162 = vmatpush1.msra.mxu0 0.0
  %163 = vmatprep.subr.mxu0 0.0
  %164 = vmatpush1.msra.mxu0 0.0
  %165 = vmatprep.subr.mxu0 0.0
  %166 = vmatpush1.msra.mxu0 0.0
  %167 = vmatprep.subr.mxu0 0.0
  %168 = vmatpush1.msra.mxu0 0.0
  %169 = vmatprep.subr.mxu0 0.0
  %170 = vmatpush1.msra.mxu0 0.0
  %171 = vmatprep.subr.mxu0 0.0
  %172 = vmatpush1.msra.mxu0 0.0
  %173 = vmatprep.subr.mxu0 0.0
  %174 = vmatpush1.msra.mxu0 0.0
  %175 = vmatprep.subr.mxu0 0.0
  %176 = vmatpush1.msra.mxu0 0.0
  %177 = vmatprep.subr.mxu0 0.0
  %178 = vmatpush1.msra.mxu0 0.0
  %179 = vmatprep.subr.mxu0 0.0
  %180 = vmatpush1.msra.mxu0 0.0
  %181 = vmatprep.subr.mxu0 0.0
  %182 = vmatpush1.msra.mxu0 0.0
  %183 = vmatprep.subr.mxu0 0.0
  %184 = vmatpush1.msra.mxu0 0.0
  %185 = vmatprep.subr.mxu0 0.0
  %186 = vmatpush1.msra.mxu0 0.0
  %187 = vmatprep.mubr.f32.mxu0 0.0
  %188 = vmatmul.mubr.f32.gmra.mrb[0].mxu0 %v112
  %v189 = vpop.f32.mrb[0].mxu0
  %v190 = vadd.f32 %v109, %v189
  %v191 = vpop.f32.mrb[0].mxu0
  %192 = vmatprep.mubr.f32.mxu0 0.0
  %193 = vmatmul.mubr.f32.gmra.mrb[0].mxu0 %v115
  %v194 = vpop.f32.mrb[0].mxu0
  %v195 = vadd.f32 %v109, %v194
  %v196 = vpop.f32.mrb[0].mxu0
  %197 = vmatprep.mubr.f32.mxu0 0.0
  %198 = vmatmul.mubr.f32.gmra.mrb[0].mxu0 %v118
  %v199 = vpop.f32.mrb[0].mxu0
  %v200 = vadd.f32 %v109, %v199
  %v201 = vpop.f32.mrb[0].mxu0
  %202 = vmatprep.mubr.f32.mxu0 0.0
  %203 = vmatmul.mubr.f32.gmra.mrb[0].mxu0 %v121
  %v204 = vpop.f32.mrb[0].mxu0
  %v205 = vadd.f32 %v109, %v204
  %v206 = vpop.f32.mrb[0].mxu0
  %207 = vdwg.mxu0
  %vm208 = vcmask 785408
  %209 = vst.msk [vmem:[%s5] sm:$0xff] %vm208, %v190
  %210 = vst.msk [vmem:[%s5 + $0x8] sm:$0xff] %vm208, %v195
  %211 = vst.msk [vmem:[%s5 + $0x10] sm:$0xff] %vm208, %v200
  %212 = vst.msk [vmem:[%s5 + $0x18] sm:$0xff] %vm208, %v205
  // Predicated region
  $region22: #{dilated_transformer_layer.3} parent=0 // pred_check
    _
  $region23: #{dilated_transformer_layer.3} parent=0 // pred_check_branch
    %214 = sbr.rel (0) target = $region25
  $region24: #{dilated_transformer_layer.3} parent=0 // pred_region
    _
  $region25: #{dilated_transformer_layer.3} parent=0 // pred_fallthru
    _
  // Predicated region
  $region26: #{dilated_transformer_layer.3} parent=0 // pred_check
    _
  $region27: #{dilated_transformer_layer.3} parent=0 // pred_check_branch
    %216 = sbr.rel (0) target = $region29
  $region28: #{dilated_transformer_layer.3} parent=0 // pred_region
    _
  $region29: #{dilated_transformer_layer.3} parent=0 // pred_fallthru
    _

// kernel: dilated_transformer_layer.4
$region0: #{dilated_transformer_layer.4}
  #allocation0 [shape = 'u32[]', space=smem, size = 0x4, offset = 0x4, fixed_abs, tag = 'smem constant byte address 0x4 - core index']
  #allocation1 [shape = 'u32[144,128]{1,0:T(1,128)}', space=vmem, size = 0x12000, scoped, tag = 'internal scratch']
  %s0 = inlined_call_operand.vmem [shape: f32[2,16,96], index: 0, kind: input, shape index: {}]
  %s1 = inlined_call_operand.vmem [shape: f32[2,16,32], index: 1, kind: input, shape index: {}]
  %s2 = inlined_call_operand.vmem [shape: f32[32,24], index: 2, kind: input, shape index: {}]
  %s3 = inlined_call_operand.vmem [shape: f32[192,24], index: 3, kind: input, shape index: {}]
  %s4 = inlined_call_operand.vmem [shape: f32[24,192], index: 4, kind: input, shape index: {}]
  %s5 = inlined_call_operand.vmem [shape: f32[4,32], index: 5, kind: input, shape index: {}]
  %s6 = inlined_call_operand.vmem [shape: f32[2,16,32], index: 6, kind: output, shape index: {0}]
  %s7 = inlined_call_operand.hbm [shape: f32[2,16,32], index: 7, kind: output, shape index: {1}]
  %8 = xla_tuple %s6, %s7
  %s9 = sld [smem:[#allocation0]]
  $region65: #{dilated_transformer_layer.4} parent=0
    _
  %s11 = ssub.s32 1, %s9
  %s12 = scalar_select 0, %s11, %s9
  $region1: #{dilated_transformer_layer.4} parent=0
    #allocation2 [shape = 'u8[16384]{0}', space=vmem, size = 0x4000, scoped, tag = 'output window, operand 1']
    #allocation3 [shape = 's32[2]{0}', space=sflag, size = 0x8, scoped, tag = 'scoped memory for dilated_transformer_layer.4']
    %13 = vsyncpa [#allocation3], 0
    %s14 = scalar_lea.sflag [#allocation3], 1
    %15 = vsyncpa %s14, 0
    loop: start=0, step=1, limit=4
    $region2: #{dilated_transformer_layer.4} parent=1 // loop_pre_header
      _
    $region3: #{dilated_transformer_layer.4} parent=1 // loop_header
      %s17 = sphi 0, %s21
      %p18 = scmp.ge.s32.totalorder %s17, 4
      %s27 = sphi 0, %s29
      %s30 = sphi 0, %s27
      %s31 = sphi 0, %s30
      %s47 = sphi 0, %s31
      %s53 = sphi 0, %s55
      %s56 = sphi 0, %s53
      %s57 = sphi 0, %s56
      %s73 = sphi 0, %s57
      %s77 = sphi 0, %s77
      %s79 = sphi 0, %s77
      %s80 = sphi 0, %s79
      %s94 = sphi 0, %s80
      %s98 = sphi 0, %s98
      %s100 = sphi 0, %s98
      %s101 = sphi 0, %s100
      %s115 = sphi 0, %s101
      %s119 = sphi 0, %s119
      %s121 = sphi 0, %s119
      %s122 = sphi 0, %s121
      %s136 = sphi 0, %s122
      %s140 = sphi 0, %s140
      %s142 = sphi 0, %s140
      %s143 = sphi 0, %s142
      %s157 = sphi 0, %s143
      %s163 = sphi 0, %s165
      %s166 = sphi 0, %s163
      %s167 = sphi 0, %s166
      %s183 = sphi 0, %s167
      %s189 = sphi 0, %s191
      %s192 = sphi 0, %s189
      %s193 = sphi 0, %s192
      %s209 = sphi 0, %s193
    $region4: #{dilated_transformer_layer.4} parent=1 // loop_header_branch
      %20 = sbr.rel (%p18) target = $region8
    $region5: #{dilated_transformer_layer.4} parent=1 // loop_body
      %s22 = ssub.s32 %s17, 1
      %s23 = ssub.s32 %s17, 2
      %s24 = sadd.s32 %s17, 1
      %s25 = ssub.s32 %s17, %s24
      %p26 = scmp.eq.s32.totalorder %s25, 0
      %s28 = sadd.s32 %s27, 1
      %s29 = scalar_select %p26, %s27, %s28
      %p32 = pneg %p26
      %p33 = scmp.eq.s32.totalorder %s17, 1
      %p34 = por %p32, %p33
      %p35 = scmp.ne.s32.totalorder %s27, %s30
      %p36 = scmp.eq.s32.totalorder %s17, 0
      %p37 = por %p35, %p36
      %p38 = scmp.ne.s32.totalorder %s27, %s30
      %p39 = scmp.eq.s32.totalorder %s22, 1
      %p40 = por %p38, %p39
      %p41 = scmp.ne.s32.totalorder %s30, %s31
      %p42 = scmp.eq.s32.totalorder %s22, 0
      %p43 = por %p41, %p42
      %p44 = scmp.ne.s32.totalorder %s30, %s31
      %p45 = scmp.eq.s32.totalorder %s23, 1
      %p46 = por %p44, %p45
      %p48 = scmp.ne.s32.totalorder %s31, %s47
      %p49 = scmp.eq.s32.totalorder %s23, 0
      %p50 = por %p48, %p49
      %s51 = ssub.s32 %s17, %s24
      %p52 = scmp.eq.s32.totalorder %s51, 0
      %s54 = sadd.s32 %s53, 1
      %s55 = scalar_select %p52, %s53, %s54
      %p58 = pneg %p52
      %p59 = scmp.eq.s32.totalorder %s17, 1
      %p60 = por %p58, %p59
      %p61 = scmp.ne.s32.totalorder %s53, %s56
      %p62 = scmp.eq.s32.totalorder %s17, 0
      %p63 = por %p61, %p62
      %p64 = scmp.ne.s32.totalorder %s53, %s56
      %p65 = scmp.eq.s32.totalorder %s22, 1
      %p66 = por %p64, %p65
      %p67 = scmp.ne.s32.totalorder %s56, %s57
      %p68 = scmp.eq.s32.totalorder %s22, 0
      %p69 = por %p67, %p68
      %p70 = scmp.ne.s32.totalorder %s56, %s57
      %p71 = scmp.eq.s32.totalorder %s23, 1
      %p72 = por %p70, %p71
      %p74 = scmp.ne.s32.totalorder %s57, %s73
      %p75 = scmp.eq.s32.totalorder %s23, 0
      %p76 = por %p74, %p75
      %s78 = sadd.s32 %s77, 1
      %p81 = scmp.eq.s32.totalorder %s17, 1
      %p82 = scmp.ne.s32.totalorder %s77, %s79
      %p83 = scmp.eq.s32.totalorder %s17, 0
      %p84 = por %p82, %p83
      %p85 = scmp.ne.s32.totalorder %s77, %s79
      %p86 = scmp.eq.s32.totalorder %s22, 1
      %p87 = por %p85, %p86
      %p88 = scmp.ne.s32.totalorder %s79, %s80
      %p89 = scmp.eq.s32.totalorder %s22, 0
      %p90 = por %p88, %p89
      %p91 = scmp.ne.s32.totalorder %s79, %s80
      %p92 = scmp.eq.s32.totalorder %s23, 1
      %p93 = por %p91, %p92
      %p95 = scmp.ne.s32.totalorder %s80, %s94
      %p96 = scmp.eq.s32.totalorder %s23, 0
      %p97 = por %p95, %p96
      %s99 = sadd.s32 %s98, 1
      %p102 = scmp.eq.s32.totalorder %s17, 1
      %p103 = scmp.ne.s32.totalorder %s98, %s100
      %p104 = scmp.eq.s32.totalorder %s17, 0
      %p105 = por %p103, %p104
      %p106 = scmp.ne.s32.totalorder %s98, %s100
      %p107 = scmp.eq.s32.totalorder %s22, 1
      %p108 = por %p106, %p107
      %p109 = scmp.ne.s32.totalorder %s100, %s101
      %p110 = scmp.eq.s32.totalorder %s22, 0
      %p111 = por %p109, %p110
      %p112 = scmp.ne.s32.totalorder %s100, %s101
      %p113 = scmp.eq.s32.totalorder %s23, 1
      %p114 = por %p112, %p113
      %p116 = scmp.ne.s32.totalorder %s101, %s115
      %p117 = scmp.eq.s32.totalorder %s23, 0
      %p118 = por %p116, %p117
      %s120 = sadd.s32 %s119, 1
      %p123 = scmp.eq.s32.totalorder %s17, 1
      %p124 = scmp.ne.s32.totalorder %s119, %s121
      %p125 = scmp.eq.s32.totalorder %s17, 0
      %p126 = por %p124, %p125
      %p127 = scmp.ne.s32.totalorder %s119, %s121
      %p128 = scmp.eq.s32.totalorder %s22, 1
      %p129 = por %p127, %p128
      %p130 = scmp.ne.s32.totalorder %s121, %s122
      %p131 = scmp.eq.s32.totalorder %s22, 0
      %p132 = por %p130, %p131
      %p133 = scmp.ne.s32.totalorder %s121, %s122
      %p134 = scmp.eq.s32.totalorder %s23, 1
      %p135 = por %p133, %p134
      %p137 = scmp.ne.s32.totalorder %s122, %s136
      %p138 = scmp.eq.s32.totalorder %s23, 0
      %p139 = por %p137, %p138
      %s141 = sadd.s32 %s140, 1
      %p144 = scmp.eq.s32.totalorder %s17, 1
      %p145 = scmp.ne.s32.totalorder %s140, %s142
      %p146 = scmp.eq.s32.totalorder %s17, 0
      %p147 = por %p145, %p146
      %p148 = scmp.ne.s32.totalorder %s140, %s142
      %p149 = scmp.eq.s32.totalorder %s22, 1
      %p150 = por %p148, %p149
      %p151 = scmp.ne.s32.totalorder %s142, %s143
      %p152 = scmp.eq.s32.totalorder %s22, 0
      %p153 = por %p151, %p152
      %p154 = scmp.ne.s32.totalorder %s142, %s143
      %p155 = scmp.eq.s32.totalorder %s23, 1
      %p156 = por %p154, %p155
      %p158 = scmp.ne.s32.totalorder %s143, %s157
      %p159 = scmp.eq.s32.totalorder %s23, 0
      %p160 = por %p158, %p159
      %s161 = ssub.s32 %s17, %s24
      %p162 = scmp.eq.s32.totalorder %s161, 0
      %s164 = sadd.s32 %s163, 1
      %s165 = scalar_select %p162, %s163, %s164
      %p168 = pneg %p162
      %p169 = scmp.eq.s32.totalorder %s17, 1
      %p170 = por %p168, %p169
      %p171 = scmp.ne.s32.totalorder %s163, %s166
      %p172 = scmp.eq.s32.totalorder %s17, 0
      %p173 = por %p171, %p172
      %p174 = scmp.ne.s32.totalorder %s163, %s166
      %p175 = scmp.eq.s32.totalorder %s22, 1
      %p176 = por %p174, %p175
      %p177 = scmp.ne.s32.totalorder %s166, %s167
      %p178 = scmp.eq.s32.totalorder %s22, 0
      %p179 = por %p177, %p178
      %p180 = scmp.ne.s32.totalorder %s166, %s167
      %p181 = scmp.eq.s32.totalorder %s23, 1
      %p182 = por %p180, %p181
      %p184 = scmp.ne.s32.totalorder %s167, %s183
      %p185 = scmp.eq.s32.totalorder %s23, 0
      %p186 = por %p184, %p185
      %s187 = ssub.s32 %s17, %s24
      %p188 = scmp.eq.s32.totalorder %s187, 0
      %s190 = sadd.s32 %s189, 1
      %s191 = scalar_select %p188, %s189, %s190
      %p194 = pneg %p188
      %p195 = scmp.eq.s32.totalorder %s17, 1
      %p196 = por %p194, %p195
      %p197 = scmp.ne.s32.totalorder %s189, %s192
      %p198 = scmp.eq.s32.totalorder %s17, 0
      %p199 = por %p197, %p198
      %p200 = scmp.ne.s32.totalorder %s189, %s192
      %p201 = scmp.eq.s32.totalorder %s22, 1
      %p202 = por %p200, %p201
      %p203 = scmp.ne.s32.totalorder %s192, %s193
      %p204 = scmp.eq.s32.totalorder %s22, 0
      %p205 = por %p203, %p204
      %p206 = scmp.ne.s32.totalorder %s192, %s193
      %p207 = scmp.eq.s32.totalorder %s23, 1
      %p208 = por %p206, %p207
      %p210 = scmp.ne.s32.totalorder %s193, %s209
      %p211 = scmp.eq.s32.totalorder %s23, 0
      %p212 = por %p210, %p211
      %p213 = scmp.le.s32.totalorder 1, %s17
      %p214 = scmp.lt.s32.totalorder %s17, 3
      %p215 = pnand %p213, %p214
      %p216 = pneg %p215
      // Predicated region
      $region9: #{dilated_transformer_layer.4} parent=5 // pred_check
        _
      $region10: #{dilated_transformer_layer.4} parent=5 // pred_check_branch
        %218 = sbr.rel (%p215) target = $region12
      $region11: #{dilated_transformer_layer.4} parent=5 // pred_region
        %s219 = ssub.s32 %s17, 1
        // Predicated region
        $region13: #{dilated_transformer_layer.4} parent=11 // pred_check
          %p220 = pneg %p90
        $region14: #{dilated_transformer_layer.4} parent=11 // pred_check_branch
          %222 = sbr.rel (%p220) target = $region16
        $region15: #{dilated_transformer_layer.4} parent=11 // pred_region
          _
        $region16: #{dilated_transformer_layer.4} parent=11 // pred_fallthru
          _
        // Predicated region
        $region17: #{dilated_transformer_layer.4} parent=11 // pred_check
          %p223 = pneg %p111
        $region18: #{dilated_transformer_layer.4} parent=11 // pred_check_branch
          %225 = sbr.rel (%p223) target = $region20
        $region19: #{dilated_transformer_layer.4} parent=11 // pred_region
          _
        $region20: #{dilated_transformer_layer.4} parent=11 // pred_fallthru
          _
        // Predicated region
        $region21: #{dilated_transformer_layer.4} parent=11 // pred_check
          %p226 = pneg %p132
        $region22: #{dilated_transformer_layer.4} parent=11 // pred_check_branch
          %228 = sbr.rel (%p226) target = $region24
        $region23: #{dilated_transformer_layer.4} parent=11 // pred_region
          _
        $region24: #{dilated_transformer_layer.4} parent=11 // pred_fallthru
          _
        // Predicated region
        $region25: #{dilated_transformer_layer.4} parent=11 // pred_check
          %p229 = pneg %p153
        $region26: #{dilated_transformer_layer.4} parent=11 // pred_check_branch
          %231 = sbr.rel (%p229) target = $region28
        $region27: #{dilated_transformer_layer.4} parent=11 // pred_region
          _
        $region28: #{dilated_transformer_layer.4} parent=11 // pred_fallthru
          _
      $region12: #{dilated_transformer_layer.4} parent=5 // pred_fallthru
        _
      %p232 = scmp.lt.s32.totalorder %s17, 2
      // Predicated region
      $region29: #{dilated_transformer_layer.4} parent=5 // pred_check
        %p233 = pneg %p232
      $region30: #{dilated_transformer_layer.4} parent=5 // pred_check_branch
        %235 = sbr.rel (%p233) target = $region32
      $region31: #{dilated_transformer_layer.4} parent=5 // pred_region
        // Predicated region
        $region33: #{dilated_transformer_layer.4} parent=31 // pred_check
          %p236 = pneg %p37
        $region34: #{dilated_transformer_layer.4} parent=31 // pred_check_branch
          %238 = sbr.rel (%p236) target = $region36
        $region35: #{dilated_transformer_layer.4} parent=31 // pred_region
          %p239 = scmp.lt.s32.totalorder %s17, 1
          %s240 = scalar_select %p239, %s17, 1
          %s241 = smul.addr %s240, 2
          %s242 = smul.addr %s241, 8
          %s243 = scalar_lea.vmem %s0, %s242
        $region36: #{dilated_transformer_layer.4} parent=31 // pred_fallthru
          _
        // Predicated region
        $region37: #{dilated_transformer_layer.4} parent=31 // pred_check
          %p244 = pneg %p63
        $region38: #{dilated_transformer_layer.4} parent=31 // pred_check_branch
          %246 = sbr.rel (%p244) target = $region40
        $region39: #{dilated_transformer_layer.4} parent=31 // pred_region
          %p247 = scmp.lt.s32.totalorder %s17, 1
          %s248 = scalar_select %p247, %s17, 1
          %s249 = smul.addr %s248, 2
          %s250 = smul.addr %s249, 8
          %s251 = scalar_lea.vmem %s1, %s250
        $region40: #{dilated_transformer_layer.4} parent=31 // pred_fallthru
          _
      $region32: #{dilated_transformer_layer.4} parent=5 // pred_fallthru
        _
      %p252 = scmp.le.s32.totalorder 1, %s17
      %p253 = scmp.lt.s32.totalorder %s17, 3
      %p254 = pnand %p252, %p253
      %p255 = pneg %p254
      // Predicated region
      $region41: #{dilated_transformer_layer.4} parent=5 // pred_check
        _
      $region42: #{dilated_transformer_layer.4} parent=5 // pred_check_branch
        %257 = sbr.rel (%p254) target = $region44
      $region43: #{dilated_transformer_layer.4} parent=5 // pred_region
        %s258 = ssub.s32 %s17, 1
        %p259 = scmp.lt.s32.totalorder %s22, 1
        %s260 = scalar_select %p259, %s22, 1
        %s261 = smul.addr %s260, 2
        %s262 = smul.addr %s261, 8
        %s263 = scalar_lea.vmem %s0, %s262
        %p264 = pneg %p43
        %p265 = pneg %p40
        %p266 = scmp.lt.s32.totalorder %s22, 1
        %s267 = scalar_select %p266, %s22, 1
        %s268 = smul.addr %s267, 2
        %s269 = smul.addr %s268, 8
        %s270 = scalar_lea.vmem %s1, %s269
        %p271 = pneg %p69
        %p272 = pneg %p66
        %p273 = pneg %p90
        %p274 = pneg %p87
        %p275 = pneg %p111
        %p276 = pneg %p108
        %p277 = pneg %p132
        %p278 = pneg %p129
        %p279 = pneg %p153
        %p280 = pneg %p150
        %p281 = pneg %p179
        %p282 = pneg %p176
        %p283 = scmp.lt.s32.totalorder %s22, 1
        %s284 = scalar_select %p283, %s22, 1
        %s285 = smul.addr %s284, 2
        %s286 = smul.addr %s285, 8
        %s287 = scalar_lea.vmem %s6, %s286
        %p288 = pneg %p205
        %p289 = pneg %p202
        %s290 = sand.u32 %s192, 1
        %s291 = scalar_lea.sflag [#allocation3], %s290
        %s292 = sand.u32 %s192, 1
        %s293 = smul.addr %s292, 16
        %s294 = scalar_lea.vmem [#allocation2], %s293
        %p295 = scmp.lt.s32.totalorder %s22, 1
        %s296 = scalar_select %p295, %s22, 1
        %s297 = smul.addr %s296, 2
        %s298 = smul.addr %s297, 8
        %s299 = scalar_lea.vmem %s0, %s298
        %p300 = scmp.lt.s32.totalorder %s22, 1
        %s301 = scalar_select %p300, %s22, 1
        %s302 = smul.addr %s301, 2
        %s303 = smul.addr %s302, 8
        %s304 = scalar_lea.vmem %s1, %s303
        %p305 = scmp.lt.s32.totalorder %s22, 1
        %s306 = scalar_select %p305, %s22, 1
        %s307 = smul.addr %s306, 2
        %s308 = smul.addr %s307, 8
        %s309 = scalar_lea.vmem %s6, %s308
        %v310 = vld [vmem:[%s299] sm:$0xff]
        %v311 = vld [vmem:[%s299 + $0x8] sm:$0xff]
        %v312 = vld [vmem:[%s2] sm:$0xff]
        %v313 = vld [vmem:[%s2 + $0x8] sm:$0xff]
        %v314 = vld [vmem:[%s2 + $0x10] sm:$0xff]
        %v315 = vld [vmem:[%s2 + $0x18] sm:$0xff]
        %vm316 = vcmask 261120
        %v318 = vsel %vm316, %v310, 0
        %v321 = vsel %vm316, %v311, 0
        %323 = vmatprep.subr.mxu0 0.0
        %324 = vmatpush1.msra.mxu0 %v312
        %325 = vmatprep.subr.mxu0 0.0
        %326 = vmatpush1.msra.mxu0 %v313
        %327 = vmatprep.subr.mxu0 0.0
        %328 = vmatpush1.msra.mxu0 %v314
        %329 = vmatprep.subr.mxu0 0.0
        %330 = vmatpush1.msra.mxu0 %v315
        %331 = vmatprep.subr.mxu0 0.0
        %332 = vmatpush1.msra.mxu0 0.0
        %333 = vmatprep.subr.mxu0 0.0
        %334 = vmatpush1.msra.mxu0 0.0
        %335 = vmatprep.subr.mxu0 0.0
        %336 = vmatpush1.msra.mxu0 0.0
        %337 = vmatprep.subr.mxu0 0.0
        %338 = vmatpush1.msra.mxu0 0.0
        %339 = vmatprep.subr.mxu0 0.0
        %340 = vmatpush1.msra.mxu0 0.0
        %341 = vmatprep.subr.mxu0 0.0
        %342 = vmatpush1.msra.mxu0 0.0
        %343 = vmatprep.subr.mxu0 0.0
        %344 = vmatpush1.msra.mxu0 0.0
        %345 = vmatprep.subr.mxu0 0.0
        %346 = vmatpush1.msra.mxu0 0.0
        %347 = vmatprep.subr.mxu0 0.0
        %348 = vmatpush1.msra.mxu0 0.0
        %349 = vmatprep.subr.mxu0 0.0
        %350 = vmatpush1.msra.mxu0 0.0
        %351 = vmatprep.subr.mxu0 0.0
        %352 = vmatpush1.msra.mxu0 0.0
        %353 = vmatprep.subr.mxu0 0.0
        %354 = vmatpush1.msra.mxu0 0.0
        %355 = vmatprep.subr.mxu0 0.0
        %356 = vmatpush1.msra.mxu0 0.0
        %357 = vmatprep.subr.mxu0 0.0
        %358 = vmatpush1.msra.mxu0 0.0
        %359 = vmatprep.subr.mxu0 0.0
        %360 = vmatpush1.msra.mxu0 0.0
        %361 = vmatprep.subr.mxu0 0.0
        %362 = vmatpush1.msra.mxu0 0.0
        %363 = vmatprep.subr.mxu0 0.0
        %364 = vmatpush1.msra.mxu0 0.0
        %365 = vmatprep.subr.mxu0 0.0
        %366 = vmatpush1.msra.mxu0 0.0
        %367 = vmatprep.subr.mxu0 0.0
        %368 = vmatpush1.msra.mxu0 0.0
        %369 = vmatprep.subr.mxu0 0.0
        %370 = vmatpush1.msra.mxu0 0.0
        %371 = vmatprep.subr.mxu0 0.0
        %372 = vmatpush1.msra.mxu0 0.0
        %373 = vmatprep.subr.mxu0 0.0
        %374 = vmatpush1.msra.mxu0 0.0
        %375 = vmatprep.subr.mxu0 0.0
        %376 = vmatpush1.msra.mxu0 0.0
        %377 = vmatprep.subr.mxu0 0.0
        %378 = vmatpush1.msra.mxu0 0.0
        %379 = vmatprep.subr.mxu0 0.0
        %380 = vmatpush1.msra.mxu0 0.0
        %381 = vmatprep.subr.mxu0 0.0
        %382 = vmatpush1.msra.mxu0 0.0
        %383 = vmatprep.subr.mxu0 0.0
        %384 = vmatpush1.msra.mxu0 0.0
        %385 = vmatprep.subr.mxu0 0.0
        %386 = vmatpush1.msra.mxu0 0.0
        %387 = vmatprep.mubr.f32.mxu0 0.0
        %388 = vmatmul.mubr.f32.gmra.mrb[0].mxu0 %v318
        %v389 = vpop.f32.mrb[0].mxu0
        %v390 = vadd.f32 0.0, %v389
        %v391 = vpop.f32.mrb[0].mxu0
        %392 = vmatprep.mubr.f32.mxu0 0.0
        %393 = vmatmul.mubr.f32.gmra.mrb[0].mxu0 %v321
        %v394 = vpop.f32.mrb[0].mxu0
        %v395 = vadd.f32 0.0, %v394
        %v396 = vpop.f32.mrb[0].mxu0
        %397 = vdwg.mxu0
        %vm399 = vcmask 1046528
        %v400 = vrot.slane %v310, 1
        %v401 = vrot.slane %v311, 1
        %v402 = vsel %vm399, %v400, %v401
        %v403 = vrot.slane 0.0, 1
        %v404 = vsel %vm399, %v401, %v403
        %405 = vrot.lane.b32.xlu0 %v402, 96
        %v406 = vpop.permute.xlu0 %405
        %407 = vrot.lane.b32.xlu0 %v404, 96
        %v408 = vpop.permute.xlu0 %407
        %v411 = vmul.f32 %v310, %v406
        %v412 = vmul.f32 %v311, %v408
        %413 = vrot.lane.b32.xlu0 %v310, 96
        %v414 = vpop.permute.xlu0 %413
        %415 = vrot.lane.b32.xlu0 %v311, 96
        %v416 = vpop.permute.xlu0 %415
        %v419 = vmul.f32 %v310, %v414
        %v420 = vmul.f32 %v311, %v416
        %v421 = vrot.slane 0.0, 3
        %vm423 = vcmask 1040384
        %v424 = vrot.slane %v310, 7
        %v425 = vrot.slane %v311, 7
        %v426 = vsel %vm423, %v424, %v425
        %v428 = vsel %vm423, %v421, %v424
        %430 = vrot.lane.b32.xlu0 %v428, 96
        %v431 = vpop.permute.xlu0 %430
        %432 = vrot.lane.b32.xlu0 %v426, 96
        %v433 = vpop.permute.xlu0 %432
        %v436 = vmul.f32 %v310, %v431
        %v437 = vmul.f32 %v311, %v433
        %v438 = vrot.slane 0.0, 2
        %vm440 = vcmask 1041408
        %v441 = vrot.slane %v310, 6
        %v442 = vrot.slane %v311, 6
        %v443 = vsel %vm440, %v441, %v442
        %v445 = vsel %vm440, %v438, %v441
        %447 = vrot.lane.b32.xlu0 %v445, 96
        %v448 = vpop.permute.xlu0 %447
        %449 = vrot.lane.b32.xlu0 %v443, 96
        %v450 = vpop.permute.xlu0 %449
        %v453 = vmul.f32 %v310, %v448
        %v454 = vmul.f32 %v311, %v450
        %vm456 = vcmask 1042432
        %v457 = vrot.slane %v310, 5
        %v458 = vrot.slane %v311, 5
        %v459 = vsel %vm456, %v457, %v458
        %v461 = vsel %vm456, %v403, %v457
        %463 = vrot.lane.b32.xlu0 %v461, 96
        %v464 = vpop.permute.xlu0 %463
        %465 = vrot.lane.b32.xlu0 %v459, 96
        %v466 = vpop.permute.xlu0 %465
        %v469 = vmul.f32 %v310, %v464
        %v470 = vmul.f32 %v311, %v466
        %vm471 = vcmask 1043456
        %v472 = vrot.slane %v310, 4
        %v473 = vrot.slane %v311, 4
        %v474 = vsel %vm471, %v472, %v473
        %v476 = vsel %vm471, 0.0, %v472
        %478 = vrot.lane.b32.xlu0 %v476, 96
        %v479 = vpop.permute.xlu0 %478
        %480 = vrot.lane.b32.xlu0 %v474, 96
        %v481 = vpop.permute.xlu0 %480
        %v484 = vmul.f32 %v310, %v479
        %v485 = vmul.f32 %v311, %v481
        %488 = vrot.lane.b32.xlu0 %v419, 32
        %v489 = vpop.permute.xlu0 %488
        %490 = vrot.lane.b32.xlu0 %v420, 32
        %v491 = vpop.permute.xlu0 %490
        %496 = vrot.lane.b32.xlu0 %v436, 64
        %v497 = vpop.permute.xlu0 %496
        %498 = vrot.lane.b32.xlu0 %v437, 64
        %v499 = vpop.permute.xlu0 %498
        %504 = vrot.lane.b32.xlu0 %v453, 96
        %v505 = vpop.permute.xlu0 %504
        %506 = vrot.lane.b32.xlu0 %v454, 96
        %v507 = vpop.permute.xlu0 %506
        %512 = vrot.lane.b32.xlu0 %v484, 32
        %v513 = vpop.permute.xlu0 %512
        %514 = vrot.lane.b32.xlu0 %v485, 32
        %v515 = vpop.permute.xlu0 %514
        %v518 = vsel %vm316, %v411, %v489
        %v519 = vsel %vm316, %v412, %v491
        %vm520 = vcmask 523264
        %v521 = vsel %vm520, %v518, %v497
        %v522 = vsel %vm520, %v519, %v499
        %vm523 = vcmask 785408
        %v524 = vsel %vm523, %v521, %v505
        %v525 = vsel %vm523, %v522, %v507
        %v526 = vsel %vm316, %v469, %v513
        %v527 = vsel %vm316, %v470, %v515
        %v528 = vld [vmem:[%s3] sm:$0xff]
        %v529 = vld [vmem:[%s3 + $0x8] sm:$0xff]
        %v530 = vld [vmem:[%s3 + $0x10] sm:$0xff]
        %v531 = vld [vmem:[%s3 + $0x18] sm:$0xff]
        %v532 = vld [vmem:[%s3 + $0x20] sm:$0xff]
        %v533 = vld [vmem:[%s3 + $0x28] sm:$0xff]
        %v534 = vld [vmem:[%s3 + $0x30] sm:$0xff]
        %v535 = vld [vmem:[%s3 + $0x38] sm:$0xff]
        %v536 = vld [vmem:[%s3 + $0x40] sm:$0xff]
        %v537 = vld [vmem:[%s3 + $0x48] sm:$0xff]
        %v538 = vld [vmem:[%s3 + $0x50] sm:$0xff]
        %v539 = vld [vmem:[%s3 + $0x58] sm:$0xff]
        %v540 = vld [vmem:[%s3 + $0x60] sm:$0xff]
        %v541 = vld [vmem:[%s3 + $0x68] sm:$0xff]
        %v542 = vld [vmem:[%s3 + $0x70] sm:$0xff]
        %v543 = vld [vmem:[%s3 + $0x78] sm:$0xff]
        %v544 = vld [vmem:[%s3 + $0x80] sm:$0xff]
        %v545 = vld [vmem:[%s3 + $0x88] sm:$0xff]
        %v546 = vld [vmem:[%s3 + $0x90] sm:$0xff]
        %v547 = vld [vmem:[%s3 + $0x98] sm:$0xff]
        %v548 = vld [vmem:[%s3 + $0xa0] sm:$0xff]
        %v549 = vld [vmem:[%s3 + $0xa8] sm:$0xff]
        %v550 = vld [vmem:[%s3 + $0xb0] sm:$0xff]
        %v551 = vld [vmem:[%s3 + $0xb8] sm:$0xff]
        %v553 = vsel %vm520, %v526, 0
        %v556 = vsel %vm520, %v527, 0
        %558 = vmatprep.subr.mxu0 0.0
        %559 = vmatpush1.msra.mxu0 %v528
        %560 = vmatprep.subr.mxu0 0.0
        %561 = vmatpush1.msra.mxu0 %v529
        %562 = vmatprep.subr.mxu0 0.0
        %563 = vmatpush1.msra.mxu0 %v530
        %564 = vmatprep.subr.mxu0 0.0
        %565 = vmatpush1.msra.mxu0 %v531
        %566 = vmatprep.subr.mxu0 0.0
        %567 = vmatpush1.msra.mxu0 %v532
        %568 = vmatprep.subr.mxu0 0.0
        %569 = vmatpush1.msra.mxu0 %v533
        %570 = vmatprep.subr.mxu0 0.0
        %571 = vmatpush1.msra.mxu0 %v534
        %572 = vmatprep.subr.mxu0 0.0
        %573 = vmatpush1.msra.mxu0 %v535
        %574 = vmatprep.subr.mxu0 0.0
        %575 = vmatpush1.msra.mxu0 %v536
        %576 = vmatprep.subr.mxu0 0.0
        %577 = vmatpush1.msra.mxu0 %v537
        %578 = vmatprep.subr.mxu0 0.0
        %579 = vmatpush1.msra.mxu0 %v538
        %580 = vmatprep.subr.mxu0 0.0
        %581 = vmatpush1.msra.mxu0 %v539
        %582 = vmatprep.subr.mxu0 0.0
        %583 = vmatpush1.msra.mxu0 %v540
        %584 = vmatprep.subr.mxu0 0.0
        %585 = vmatpush1.msra.mxu0 %v541
        %586 = vmatprep.subr.mxu0 0.0
        %587 = vmatpush1.msra.mxu0 %v542
        %588 = vmatprep.subr.mxu0 0.0
        %589 = vmatpush1.msra.mxu0 %v543
        %590 = vmatprep.subr.mxu0 0.0
        %591 = vmatpush1.msra.mxu0 %v544
        %592 = vmatprep.subr.mxu0 0.0
        %593 = vmatpush1.msra.mxu0 %v545
        %594 = vmatprep.subr.mxu0 0.0
        %595 = vmatpush1.msra.mxu0 %v546
        %596 = vmatprep.subr.mxu0 0.0
        %597 = vmatpush1.msra.mxu0 %v547
        %598 = vmatprep.subr.mxu0 0.0
        %599 = vmatpush1.msra.mxu0 %v548
        %600 = vmatprep.subr.mxu0 0.0
        %601 = vmatpush1.msra.mxu0 %v549
        %602 = vmatprep.subr.mxu0 0.0
        %603 = vmatpush1.msra.mxu0 %v550
        %604 = vmatprep.subr.mxu0 0.0
        %605 = vmatpush1.msra.mxu0 %v551
        %606 = vmatprep.subr.mxu0 0.0
        %607 = vmatpush1.msra.mxu0 0.0
        %608 = vmatprep.subr.mxu0 0.0
        %609 = vmatpush1.msra.mxu0 0.0
        %610 = vmatprep.subr.mxu0 0.0
        %611 = vmatpush1.msra.mxu0 0.0
        %612 = vmatprep.subr.mxu0 0.0
        %613 = vmatpush1.msra.mxu0 0.0
        %614 = vmatprep.subr.mxu0 0.0
        %615 = vmatpush1.msra.mxu0 0.0
        %616 = vmatprep.subr.mxu0 0.0
        %617 = vmatpush1.msra.mxu0 0.0
        %618 = vmatprep.subr.mxu0 0.0
        %619 = vmatpush1.msra.mxu0 0.0
        %620 = vmatprep.subr.mxu0 0.0
        %621 = vmatpush1.msra.mxu0 0.0
        %622 = vmatprep.mubr.f32.mxu0 %v553
        %623 = vmatmul.mubr.f32.gmra.mrb[0].mxu0 %v524
        %v624 = vpop.f32.mrb[0].mxu0
        %v625 = vadd.f32 0.0, %v624
        %v626 = vpop.f32.mrb[0].mxu0
        %627 = vmatprep.mubr.f32.mxu0 %v556
        %628 = vmatmul.mubr.f32.gmra.mrb[0].mxu0 %v525
        %v629 = vpop.f32.mrb[0].mxu0
        %v630 = vadd.f32 0.0, %v629
        %v631 = vpop.f32.mrb[0].mxu0
        %632 = vdwg.mxu0
        %vm633 = vcmp.eq.f32.partialorder %v625, 0.0
        %vm634 = vcmp.eq.f32.partialorder %v630, 0.0
        %v635 = vsel %vm633, 1e-09, 0.0
        %v636 = vsel %vm634, 1e-09, 0.0
        %v637 = vadd.f32 %v625, %v390
        %v638 = vadd.f32 %v630, %v395
        %v639 = vmul.f32 %v637, 0.35355338
        %v640 = vmul.f32 %v638, 0.35355338
        %v641 = vadd.f32 %v639, %v635
        %v642 = vadd.f32 %v640, %v636
        %645 = vrot.lane.b32.xlu0 %v641, 124
        %v646 = vpop.permute.xlu0 %645
        %647 = vrot.lane.b32.xlu0 %v642, 124
        %v648 = vpop.permute.xlu0 %647
        %v651 = vmax.f32 %v641, %v646
        %v652 = vmax.f32 %v642, %v648
        %653 = vrot.lane.b32.xlu0 %v641, 120
        %v654 = vpop.permute.xlu0 %653
        %655 = vrot.lane.b32.xlu0 %v642, 120
        %v656 = vpop.permute.xlu0 %655
        %v659 = vmax.f32 %v651, %v654
        %v660 = vmax.f32 %v652, %v656
        %661 = vrot.lane.b32.xlu0 %v641, 116
        %v662 = vpop.permute.xlu0 %661
        %663 = vrot.lane.b32.xlu0 %v642, 116
        %v664 = vpop.permute.xlu0 %663
        %v667 = vmax.f32 %v659, %v662
        %v668 = vmax.f32 %v660, %v664
        %669 = vrot.lane.b32.xlu0 %v641, 112
        %v670 = vpop.permute.xlu0 %669
        %671 = vrot.lane.b32.xlu0 %v642, 112
        %v672 = vpop.permute.xlu0 %671
        %v675 = vmax.f32 %v667, %v670
        %v676 = vmax.f32 %v668, %v672
        %677 = vrot.lane.b32.xlu0 %v641, 108
        %v678 = vpop.permute.xlu0 %677
        %679 = vrot.lane.b32.xlu0 %v642, 108
        %v680 = vpop.permute.xlu0 %679
        %v683 = vmax.f32 %v675, %v678
        %v684 = vmax.f32 %v676, %v680
        %687 = vrot.lane.b32.xlu0 %v683, 4
        %v688 = vpop.permute.xlu0 %687
        %689 = vrot.lane.b32.xlu0 %v684, 4
        %v690 = vpop.permute.xlu0 %689
        %693 = vrot.lane.b32.xlu0 %v683, 8
        %v694 = vpop.permute.xlu0 %693
        %695 = vrot.lane.b32.xlu0 %v684, 8
        %v696 = vpop.permute.xlu0 %695
        %699 = vrot.lane.b32.xlu0 %v683, 12
        %v700 = vpop.permute.xlu0 %699
        %701 = vrot.lane.b32.xlu0 %v684, 12
        %v702 = vpop.permute.xlu0 %701
        %705 = vrot.lane.b32.xlu0 %v683, 16
        %v706 = vpop.permute.xlu0 %705
        %707 = vrot.lane.b32.xlu0 %v684, 16
        %v708 = vpop.permute.xlu0 %707
        %711 = vrot.lane.b32.xlu0 %v683, 20
        %v712 = vpop.permute.xlu0 %711
        %713 = vrot.lane.b32.xlu0 %v684, 20
        %v714 = vpop.permute.xlu0 %713
        %vm717 = vcmask 31744
        %v718 = vsel %vm717, %v683, %v688
        %v719 = vsel %vm717, %v684, %v690
        %vm720 = vcmask 64512
        %v721 = vsel %vm720, %v718, %v694
        %v722 = vsel %vm720, %v719, %v696
        %vm723 = vcmask 97280
        %v724 = vsel %vm723, %v721, %v700
        %v725 = vsel %vm723, %v722, %v702
        %vm726 = vcmask 130048
        %v727 = vsel %vm726, %v724, %v706
        %v728 = vsel %vm726, %v725, %v708
        %vm729 = vcmask 162816
        %v730 = vsel %vm729, %v727, %v712
        %v731 = vsel %vm729, %v728, %v714
        %v732 = vsub.f32 %v641, %v730
        %v733 = vsub.f32 %v642, %v731
        %v734 = vmul.f32 %v732, 1.442695
        %v735 = vpow.pop %v734
        %v736 = vmul.f32 %v733, 1.442695
        %v737 = vpow.pop %v736
        %740 = vrot.lane.b32.xlu0 %v735, 124
        %v741 = vpop.permute.xlu0 %740
        %742 = vrot.lane.b32.xlu0 %v737, 124
        %v743 = vpop.permute.xlu0 %742
        %v746 = vadd.f32 %v735, %v741
        %v747 = vadd.f32 %v737, %v743
        %748 = vrot.lane.b32.xlu0 %v735, 120
        %v749 = vpop.permute.xlu0 %748
        %750 = vrot.lane.b32.xlu0 %v737, 120
        %v751 = vpop.permute.xlu0 %750
        %v754 = vadd.f32 %v746, %v749
        %v755 = vadd.f32 %v747, %v751
        %756 = vrot.lane.b32.xlu0 %v735, 116
        %v757 = vpop.permute.xlu0 %756
        %758 = vrot.lane.b32.xlu0 %v737, 116
        %v759 = vpop.permute.xlu0 %758
        %v762 = vadd.f32 %v754, %v757
        %v763 = vadd.f32 %v755, %v759
        %764 = vrot.lane.b32.xlu0 %v735, 112
        %v765 = vpop.permute.xlu0 %764
        %766 = vrot.lane.b32.xlu0 %v737, 112
        %v767 = vpop.permute.xlu0 %766
        %v770 = vadd.f32 %v762, %v765
        %v771 = vadd.f32 %v763, %v767
        %772 = vrot.lane.b32.xlu0 %v735, 108
        %v773 = vpop.permute.xlu0 %772
        %774 = vrot.lane.b32.xlu0 %v737, 108
        %v775 = vpop.permute.xlu0 %774
        %v778 = vadd.f32 %v770, %v773
        %v779 = vadd.f32 %v771, %v775
        %v780 = vld [vmem:[%s4] sm:$0xff]
        %v781 = vld [vmem:[%s4 + $0x8] sm:$0xff]
        %v782 = vld [vmem:[%s4 + $0x10] sm:$0xff]
        %v783 = vld [vmem:[%s4 + $0x18] sm:$0xff]
        %v784 = vld [vmem:[%s4 + $0x20] sm:$0xff]
        %v785 = vld [vmem:[%s4 + $0x28] sm:$0xff]
        %vm786 = vcmask 195584
        %v787 = vsel %vm786, %v735, 0
        %v789 = vsel %vm786, %v737, 0
        %791 = vmatprep.subr.mxu0 %v781
        %792 = vmatpush1.msra.mxu0 %v780
        %793 = vmatprep.subr.mxu0 %v783
        %794 = vmatpush1.msra.mxu0 %v782
        %795 = vmatprep.subr.mxu0 %v785
        %796 = vmatpush1.msra.mxu0 %v784
        %797 = vmatprep.subr.mxu0 0.0
        %798 = vmatpush1.msra.mxu0 0.0
        %799 = vmatprep.subr.mxu0 0.0
        %800 = vmatpush1.msra.mxu0 0.0
        %801 = vmatprep.subr.mxu0 0.0
        %802 = vmatpush1.msra.mxu0 0.0
        %803 = vmatprep.subr.mxu0 0.0
        %804 = vmatpush1.msra.mxu0 0.0
        %805 = vmatprep.subr.mxu0 0.0
        %806 = vmatpush1.msra.mxu0 0.0
        %807 = vmatprep.subr.mxu0 0.0
        %808 = vmatpush1.msra.mxu0 0.0
        %809 = vmatprep.subr.mxu0 0.0
        %810 = vmatpush1.msra.mxu0 0.0
        %811 = vmatprep.subr.mxu0 0.0
        %812 = vmatpush1.msra.mxu0 0.0
        %813 = vmatprep.subr.mxu0 0.0
        %814 = vmatpush1.msra.mxu0 0.0
        %815 = vmatprep.subr.mxu0 0.0
        %816 = vmatpush1.msra.mxu0 0.0
        %817 = vmatprep.subr.mxu0 0.0
        %818 = vmatpush1.msra.mxu0 0.0
        %819 = vmatprep.subr.mxu0 0.0
        %820 = vmatpush1.msra.mxu0 0.0
        %821 = vmatprep.subr.mxu0 0.0
        %822 = vmatpush1.msra.mxu0 0.0
        %823 = vmatprep.subr.mxu0 0.0
        %824 = vmatpush1.msra.mxu0 0.0
        %825 = vmatprep.subr.mxu0 0.0
        %826 = vmatpush1.msra.mxu0 0.0
        %827 = vmatprep.subr.mxu0 0.0
        %828 = vmatpush1.msra.mxu0 0.0
        %829 = vmatprep.subr.mxu0 0.0
        %830 = vmatpush1.msra.mxu0 0.0
        %831 = vmatprep.subr.mxu0 0.0
        %832 = vmatpush1.msra.mxu0 0.0
        %833 = vmatprep.subr.mxu0 0.0
        %834 = vmatpush1.msra.mxu0 0.0
        %835 = vmatprep.subr.mxu0 0.0
        %836 = vmatpush1.msra.mxu0 0.0
        %837 = vmatprep.subr.mxu0 0.0
        %838 = vmatpush1.msra.mxu0 0.0
        %839 = vmatprep.subr.mxu0 0.0
        %840 = vmatpush1.msra.mxu0 0.0
        %841 = vmatprep.subr.mxu0 0.0
        %842 = vmatpush1.msra.mxu0 0.0
        %843 = vmatprep.subr.mxu0 0.0
        %844 = vmatpush1.msra.mxu0 0.0
        %845 = vmatprep.subr.mxu0 0.0
        %846 = vmatpush1.msra.mxu0 0.0
        %847 = vmatprep.subr.mxu0 0.0
        %848 = vmatpush1.msra.mxu0 0.0
        %849 = vmatprep.subr.mxu0 0.0
        %850 = vmatpush1.msra.mxu0 0.0
        %851 = vmatprep.subr.mxu0 0.0
        %852 = vmatpush1.msra.mxu0 0.0
        %853 = vmatprep.subr.mxu0 0.0
        %854 = vmatpush1.msra.mxu0 0.0
        %855 = vmatprep.mubr.f32.mxu0 0.0
        %856 = vmatmul.mubr.f32.gmra.mrb[0].mxu0 %v787
        %v857 = vpop.f32.mrb[0].mxu0
        %v858 = vadd.f32 0.0, %v857
        %v859 = vpop.f32.mrb[0].mxu0
        %v860 = vadd.f32 0.0, %v859
        %861 = vmatprep.mubr.f32.mxu0 0.0
        %862 = vmatmul.mubr.f32.gmra.mrb[0].mxu0 %v789
        %v863 = vpop.f32.mrb[0].mxu0
        %v864 = vadd.f32 0.0, %v863
        %v865 = vpop.f32.mrb[0].mxu0
        %v866 = vadd.f32 0.0, %v865
        %867 = vdwg.mxu0
        %868 = vrot.lane.b32.xlu0 %v310, 64
        %v869 = vpop.permute.xlu0 %868
        %870 = vrot.lane.b32.xlu0 %v311, 64
        %v871 = vpop.permute.xlu0 %870
        %872 = vrot.lane.b32.xlu0 0.0, 64
        %v873 = vpop.permute.xlu0 %872
        %877 = vrot.lane.b32.xlu0 %v424, 96
        %v878 = vpop.permute.xlu0 %877
        %879 = vrot.lane.b32.xlu0 %v425, 96
        %v880 = vpop.permute.xlu0 %879
        %v883 = vrot.slane %v428, 7
        %v884 = vrot.slane %v426, 7
        %v885 = vsel %vm423, %v883, %v884
        %v889 = vrot.slane %v445, 7
        %v890 = vrot.slane %v443, 7
        %v891 = vsel %vm423, %v889, %v890
        %892 = vrot.lane.b32.xlu0 %v889, 32
        %v893 = vpop.permute.xlu0 %892
        %894 = vrot.lane.b32.xlu0 %v891, 32
        %v895 = vpop.permute.xlu0 %894
        %896 = vrot.lane.b32.xlu0 %v890, 32
        %v897 = vpop.permute.xlu0 %896
        %v901 = vrot.slane %v461, 7
        %v902 = vrot.slane %v459, 7
        %v903 = vsel %vm423, %v901, %v902
        %904 = vrot.lane.b32.xlu0 %v901, 64
        %v905 = vpop.permute.xlu0 %904
        %906 = vrot.lane.b32.xlu0 %v903, 64
        %v907 = vpop.permute.xlu0 %906
        %908 = vrot.lane.b32.xlu0 %v902, 64
        %v909 = vpop.permute.xlu0 %908
        %v913 = vrot.slane %v476, 7
        %v914 = vrot.slane %v474, 7
        %v915 = vsel %vm423, %v913, %v914
        %916 = vrot.lane.b32.xlu0 %v913, 96
        %v917 = vpop.permute.xlu0 %916
        %918 = vrot.lane.b32.xlu0 %v915, 96
        %v919 = vpop.permute.xlu0 %918
        %920 = vrot.lane.b32.xlu0 %v914, 96
        %v921 = vpop.permute.xlu0 %920
        %v925 = vsel %vm316, %v869, %v878
        %v926 = vsel %vm316, %v871, %v433
        %v927 = vsel %vm316, %v873, %v880
        %v928 = vsel %vm520, %v925, %v883
        %v929 = vsel %vm520, %v926, %v885
        %v930 = vsel %vm520, %v927, %v884
        %v931 = vsel %vm523, %v928, %v893
        %v932 = vsel %vm523, %v929, %v895
        %v933 = vsel %vm523, %v930, %v897
        %v934 = vsel %vm316, %v905, %v917
        %v935 = vsel %vm316, %v907, %v919
        %v936 = vsel %vm316, %v909, %v921
        %v943 = vrot.slane %v931, 1
        %v944 = vrot.slane %v932, 1
        %v945 = vsel %vm399, %v943, %v944
        %v946 = vrot.slane %v934, 1
        %v947 = vrot.slane %v935, 1
        %v948 = vsel %vm399, %v946, %v947
        %v949 = vrot.slane %v933, 1
        %v950 = vsel %vm399, %v944, %v949
        %v951 = vrot.slane %v936, 1
        %v952 = vsel %vm399, %v947, %v951
        %v957 = vmul.f32 %v858, %v945
        %v958 = vmul.f32 %v860, %v948
        %v959 = vmul.f32 %v864, %v950
        %v960 = vmul.f32 %v866, %v952
        %963 = vrot.lane.b32.xlu0 %v957, 96
        %v964 = vpop.permute.xlu0 %963
        %965 = vrot.lane.b32.xlu0 %v959, 96
        %v966 = vpop.permute.xlu0 %965
        %v969 = vadd.f32 %v957, %v964
        %v970 = vadd.f32 %v959, %v966
        %971 = vrot.lane.b32.xlu0 %v957, 64
        %v972 = vpop.permute.xlu0 %971
        %973 = vrot.lane.b32.xlu0 %v959, 64
        %v974 = vpop.permute.xlu0 %973
        %v977 = vadd.f32 %v969, %v972
        %v978 = vadd.f32 %v970, %v974
        %979 = vrot.lane.b32.xlu0 %v957, 32
        %v980 = vpop.permute.xlu0 %979
        %981 = vrot.lane.b32.xlu0 %v959, 32
        %v982 = vpop.permute.xlu0 %981
        %v985 = vadd.f32 %v977, %v980
        %v986 = vadd.f32 %v978, %v982
        %v987 = vadd.f32 %v985, %v958
        %v988 = vadd.f32 %v986, %v960
        %991 = vrot.lane.b32.xlu0 %v958, 96
        %v992 = vpop.permute.xlu0 %991
        %993 = vrot.lane.b32.xlu0 %v960, 96
        %v994 = vpop.permute.xlu0 %993
        %v997 = vadd.f32 %v987, %v992
        %v998 = vadd.f32 %v988, %v994
        %v999 = vrcp.pop %v778
        %v1000 = vrcp.pop %v779
        %v1001 = vld [vmem:[%s5] sm:$0xf]
        %v1003 = vsel %vm717, %v999, 0
        %v1006 = vsel %vm717, %v1000, 0
        %v1009 = vsel %vm471, %v1001, 0
        %1011 = vmatprep.subr.mxu0 0.0
        %1012 = vmatpush1.msra.mxu0 %v1009
        %1013 = vmatprep.subr.mxu0 0.0
        %1014 = vmatpush1.msra.mxu0 0.0
        %1015 = vmatprep.subr.mxu0 0.0
        %1016 = vmatpush1.msra.mxu0 0.0
        %1017 = vmatprep.subr.mxu0 0.0
        %1018 = vmatpush1.msra.mxu0 0.0
        %1019 = vmatprep.subr.mxu0 0.0
        %1020 = vmatpush1.msra.mxu0 0.0
        %1021 = vmatprep.subr.mxu0 0.0
        %1022 = vmatpush1.msra.mxu0 0.0
        %1023 = vmatprep.subr.mxu0 0.0
        %1024 = vmatpush1.msra.mxu0 0.0
        %1025 = vmatprep.subr.mxu0 0.0
        %1026 = vmatpush1.msra.mxu0 0.0
        %1027 = vmatprep.subr.mxu0 0.0
        %1028 = vmatpush1.msra.mxu0 0.0
        %1029 = vmatprep.subr.mxu0 0.0
        %1030 = vmatpush1.msra.mxu0 0.0
        %1031 = vmatprep.subr.mxu0 0.0
        %1032 = vmatpush1.msra.mxu0 0.0
        %1033 = vmatprep.subr.mxu0 0.0
        %1034 = vmatpush1.msra.mxu0 0.0
        %1035 = vmatprep.subr.mxu0 0.0
        %1036 = vmatpush1.msra.mxu0 0.0
        %1037 = vmatprep.subr.mxu0 0.0
        %1038 = vmatpush1.msra.mxu0 0.0
        %1039 = vmatprep.subr.mxu0 0.0
        %1040 = vmatpush1.msra.mxu0 0.0
        %1041 = vmatprep.subr.mxu0 0.0
        %1042 = vmatpush1.msra.mxu0 0.0
        %1043 = vmatprep.subr.mxu0 0.0
        %1044 = vmatpush1.msra.mxu0 0.0
        %1045 = vmatprep.subr.mxu0 0.0
        %1046 = vmatpush1.msra.mxu0 0.0
        %1047 = vmatprep.subr.mxu0 0.0
        %1048 = vmatpush1.msra.mxu0 0.0
        %1049 = vmatprep.subr.mxu0 0.0
        %1050 = vmatpush1.msra.mxu0 0.0
        %1051 = vmatprep.subr.mxu0 0.0
        %1052 = vmatpush1.msra.mxu0 0.0
        %1053 = vmatprep.subr.mxu0 0.0
        %1054 = vmatpush1.msra.mxu0 0.0
        %1055 = vmatprep.subr.mxu0 0.0
        %1056 = vmatpush1.msra.mxu0 0.0
        %1057 = vmatprep.subr.mxu0 0.0
        %1058 = vmatpush1.msra.mxu0 0.0
        %1059 = vmatprep.subr.mxu0 0.0
        %1060 = vmatpush1.msra.mxu0 0.0
        %1061 = vmatprep.subr.mxu0 0.0
        %1062 = vmatpush1.msra.mxu0 0.0
        %1063 = vmatprep.subr.mxu0 0.0
        %1064 = vmatpush1.msra.mxu0 0.0
        %1065 = vmatprep.subr.mxu0 0.0
        %1066 = vmatpush1.msra.mxu0 0.0
        %1067 = vmatprep.subr.mxu0 0.0
        %1068 = vmatpush1.msra.mxu0 0.0
        %1069 = vmatprep.subr.mxu0 0.0
        %1070 = vmatpush1.msra.mxu0 0.0
        %1071 = vmatprep.subr.mxu0 0.0
        %1072 = vmatpush1.msra.mxu0 0.0
        %1073 = vmatprep.subr.mxu0 0.0
        %1074 = vmatpush1.msra.mxu0 0.0
        %1075 = vmatprep.mubr.f32.mxu0 0.0
        %1076 = vmatmul.mubr.f32.gmra.mrb[0].mxu0 %v1003
        %v1077 = vpop.f32.mrb[0].mxu0
        %v1078 = vadd.f32 0.0, %v1077
        %v1079 = vpop.f32.mrb[0].mxu0
        %1080 = vmatprep.mubr.f32.mxu0 0.0
        %1081 = vmatmul.mubr.f32.gmra.mrb[0].mxu0 %v1006
        %v1082 = vpop.f32.mrb[0].mxu0
        %v1083 = vadd.f32 0.0, %v1082
        %v1084 = vpop.f32.mrb[0].mxu0
        %1085 = vdwg.mxu0
        %v1086 = vmul.f32 %v997, %v1078
        %v1087 = vmul.f32 %v998, %v1083
        %v1088 = vld [vmem:[%s304] sm:$0xff]
        %v1089 = vld [vmem:[%s304 + $0x8] sm:$0xff]
        %v1090 = vadd.f32 %v1088, %v1086
        %v1091 = vadd.f32 %v1089, %v1087
        %1092 = vst.msk [vmem:[%s309] sm:$0xff] %vm316, %v1090
        %1093 = vst.msk [vmem:[%s309 + $0x8] sm:$0xff] %vm316, %v1091
        %1094 = vst.msk [vmem:[%s294] sm:$0xff] %vm316, %v1086
        %1095 = vst.msk [vmem:[%s294 + $0x8] sm:$0xff] %vm316, %v1087
        %p1096 = scmp.lt.s32.totalorder %s22, 1
        %s1097 = scalar_select %p1096, %s22, 1
        %s1098 = smul.addr %s1097, 2
        %s1099 = smul.addr %s1098, 8
        %s1100 = scalar_lea.vmem %s6, %s1099
        %s1101 = sand.u32 %s192, 1
        %s1102 = scalar_lea.sflag [#allocation3], %s1101
        %s1103 = sand.u32 %s192, 1
        %s1104 = smul.addr %s1103, 16
        %s1105 = scalar_lea.vmem [#allocation2], %s1104
        // Predicated region
        $region45: #{dilated_transformer_layer.4} parent=43 // pred_check
          %p1106 = pneg %p176
        $region46: #{dilated_transformer_layer.4} parent=43 // pred_check_branch
          %1108 = sbr.rel (%p1106) target = $region48
        $region47: #{dilated_transformer_layer.4} parent=43 // pred_region
          _
        $region48: #{dilated_transformer_layer.4} parent=43 // pred_fallthru
          _
        // Predicated region
        $region49: #{dilated_transformer_layer.4} parent=43 // pred_check
          %p1109 = pneg %p202
        $region50: #{dilated_transformer_layer.4} parent=43 // pred_check_branch
          %1111 = sbr.rel (%p1109) target = $region52
        $region51: #{dilated_transformer_layer.4} parent=43 // pred_region
          %s1113 = ssub.s32 256, 256
          %1114 = vsyncadd %s1102, %s1113
          %s1115 = smul.addr %s22, 2
          %s1116 = smul.addr %s1115, 128
          %s1117 = scalar_lea.hbm %s7, %s1116
          %s1118 = sshll.u32 %s1105, 4
          %s1119 = int_to_ptr.vmem [resolvable:$true] %s1118
          %1124 = dma.vmem_to_hbm [thread:$0]  %s1119, 256, %s1117, %s1102, 128, 128, 8
        $region52: #{dilated_transformer_layer.4} parent=43 // pred_fallthru
          _
      $region44: #{dilated_transformer_layer.4} parent=5 // pred_fallthru
        _
      %p1125 = scmp.le.s32.totalorder 2, %s17
      // Predicated region
      $region53: #{dilated_transformer_layer.4} parent=5 // pred_check
        %p1126 = pneg %p1125
      $region54: #{dilated_transformer_layer.4} parent=5 // pred_check_branch
        %1128 = sbr.rel (%p1126) target = $region56
      $region55: #{dilated_transformer_layer.4} parent=5 // pred_region
        %s1129 = ssub.s32 %s17, 2
        // Predicated region
        $region57: #{dilated_transformer_layer.4} parent=55 // pred_check
          %p1130 = pneg %p182
        $region58: #{dilated_transformer_layer.4} parent=55 // pred_check_branch
          %1132 = sbr.rel (%p1130) target = $region60
        $region59: #{dilated_transformer_layer.4} parent=55 // pred_region
          %p1133 = scmp.lt.s32.totalorder %s23, 1
          %s1134 = scalar_select %p1133, %s23, 1
          %s1135 = smul.addr %s1134, 2
          %s1136 = smul.addr %s1135, 8
          %s1137 = scalar_lea.vmem %s6, %s1136
        $region60: #{dilated_transformer_layer.4} parent=55 // pred_fallthru
          _
        // Predicated region
        $region61: #{dilated_transformer_layer.4} parent=55 // pred_check
          %p1138 = pneg %p208
        $region62: #{dilated_transformer_layer.4} parent=55 // pred_check_branch
          %1140 = sbr.rel (%p1138) target = $region64
        $region63: #{dilated_transformer_layer.4} parent=55 // pred_region
          %s1141 = sand.u32 %s193, 1
          %s1142 = scalar_lea.sflag [#allocation3], %s1141
          %s1143 = sand.u32 %s193, 1
          %s1144 = smul.addr %s1143, 16
          %s1145 = scalar_lea.vmem [#allocation2], %s1144
          %1146 = dma.done %s1142, 256
        $region64: #{dilated_transformer_layer.4} parent=55 // pred_fallthru
          _
      $region56: #{dilated_transformer_layer.4} parent=5 // pred_fallthru
        _
    $region6: #{dilated_transformer_layer.4} parent=1 // loop_footer
      %s21 = sadd.s32 1, %s17
    $region7: #{dilated_transformer_layer.4} parent=1 // loop_footer_branch
      %16 = sbr.rel target = $region3
    $region8: #{dilated_transformer_layer.4} parent=1 // loop_exit
      _
    %1147 = vsyncpa [#allocation3], 1
    %s1148 = scalar_lea.sflag [#allocation3], 1
    %1149 = vsyncpa %s1148, 1

</llo_original>
